<compile_context>
chip_gen: v7x
topology: tpu7x:2x2x1
jax: 0.10.0
libtpu: 0.0.40
codegen_flags: <defaults>
</compile_context>

<pallas_src>
import functools

import jax
import jax.numpy as jnp
from jax import lax
from jax.experimental import pallas as pl
from jax.experimental.pallas import tpu as pltpu


def _textlstm_kernel(kernel_sizes, T, B, BP, V, E, H, F, LH, C,
                     tok_ref, emb_ref, wih_ref, whh_ref, b_ref,
                     wcat_ref, convb_ref, w1_ref, b1_ref, w2_ref, b2_ref,
                     out_ref, xg_ref, seq_ref):
    TB = T * BP
    G = 4 * H

    # Per-gate scale (0.5 on i/f/o columns, 1.0 on g columns) so that
    # sigmoid(x) = 0.5*(tanh(0.5*x)+1) needs a single tanh pass per step.
    cols = lax.broadcasted_iota(jnp.int32, (1, G), 1)
    is_g = (cols >= 2 * H) & (cols < 3 * H)
    gate_scale = jnp.where(is_g, jnp.float32(1.0), jnp.float32(0.5))   # (1, 4H)

    # ------------- in-kernel embedding gather (one-hot matmul) --------------
    vocab_iota = lax.broadcasted_iota(jnp.int32, (TB, V), 1)
    onehot = (vocab_iota == tok_ref[...]).astype(jnp.float32)          # (TB, V)
    x_gath = jnp.dot(onehot, emb_ref[...],
                     preferred_element_type=jnp.float32)               # (TB, E)

    # ------------- hoisted input projection (one MXU call), pre-scaled ------
    xg_ref[...] = (jnp.dot(x_gath, wih_ref[...],
                           preferred_element_type=jnp.float32)
                   + b_ref[...]) * gate_scale                          # (TB, 4H)

    # W_hh scaled once, cast to bf16 for a single-pass MXU op per step.
    whh_s = (whh_ref[...] * gate_scale).astype(jnp.bfloat16)           # (H, 4H)

    # ------------- LSTM recurrence: static loop, aligned slices -------------
    h = jnp.zeros((BP, H), jnp.float32)
    c = jnp.zeros((BP, H), jnp.float32)
    for t in range(T):                                  # T static -> static offsets
        r0 = t * BP
        gates = xg_ref[r0:r0 + BP, :] + jnp.dot(
            h.astype(jnp.bfloat16), whh_s, preferred_element_type=jnp.float32)
        tg = jnp.tanh(gates)                            # one EUP pass over (BP,4H)
        i_g = 0.5 * tg[:, 0 * H:1 * H] + 0.5
        f_g = 0.5 * tg[:, 1 * H:2 * H] + 0.5
        g_g = tg[:, 2 * H:3 * H]
        o_g = 0.5 * tg[:, 3 * H:4 * H] + 0.5
        c = f_g * c + i_g * g_g
        h = o_g * jnp.tanh(c)
        seq_ref[r0:r0 + BP, :] = h                      # aligned (8,128) store

    # ---- conv taps as ONE matmul + static shifted adds; pool by running max ----
    Y = jnp.dot(seq_ref[...], wcat_ref[...],
                preferred_element_type=jnp.float32)     # (TB, sum_k k*F)
    col = 0
    pooled = []
    for k in kernel_sizes:
        P = T - k + 1
        acc = Y[0:P * BP, col:col + F]
        for j in range(1, k):                           # static row/lane shifts
            acc = acc + Y[j * BP:(j + P) * BP, col + j * F:col + (j + 1) * F]
        m = acc[0:BP, :]
        for p in range(1, P):                           # time max-pool, VPU only
            m = jnp.maximum(m, acc[p * BP:(p + 1) * BP, :])
        pooled.append(m)
        col += k * F

    # conv bias added once after the max (max(x)+b == max(x+b)); merged Linear.
    feat = jnp.concatenate(pooled, axis=1) + convb_ref[...]            # (BP, nks*F)

    # ------------- linear2: Linear -> ReLU -> Dropout(eval id) -> Linear ----
    h1 = jnp.maximum(
        jnp.dot(feat, w1_ref[...], preferred_element_type=jnp.float32)
        + b1_ref[...], 0.0)
    out = jnp.dot(h1, w2_ref[...], preferred_element_type=jnp.float32) + b2_ref[...]
    out_ref[...] = out[0:B, :].astype(out_ref.dtype)


def textlstm_forward(x_tokens, params, *, kernel_sizes):
    emb = params["embedding"]                        # (V, E)
    B, T = x_tokens.shape
    V, E = emb.shape
    H = params["w_hh"].shape[0]                      # (H, 4H)
    F = params["conv_w"][0].shape[1]                 # stored (k, F, H)
    LH = params["w1"].shape[1]
    C = params["w2"].shape[1]
    nks = len(kernel_sizes)
    BP = ((B + 7) // 8) * 8                          # pad batch to one sublane tile

    # Tokens: pad batch, go time-major, flatten.  (tiny int32 glue only; the f32
    # embedding gather itself happens inside the kernel.)
    tok = jnp.pad(x_tokens.astype(jnp.int32), ((0, BP - B), (0, 0)))
    tok = tok.T.reshape(T * BP, 1)

    # Layout plumbing at trace time (zero kernel cost):
    #   all conv tap weights lane-concatenated into one (H, sum_k k*F) matrix,
    #   conv biases concatenated into one (1, nks*F) row.
    wcat = jnp.concatenate(
        [jnp.transpose(wk, (2, 0, 1)).reshape(H, wk.shape[0] * F)
         for wk in params["conv_w"]], axis=1)
    convb = jnp.concatenate(list(params["conv_b"]), axis=1)

    inputs = [tok, emb, params["w_ih"], params["w_hh"], params["b"],
              wcat, convb, params["w1"], params["b1"], params["w2"], params["b2"]]

    vmem = pltpu.MemorySpace.VMEM
    kernel = functools.partial(_textlstm_kernel, tuple(kernel_sizes),
                               T, B, BP, V, E, H, F, LH, C)
    return pl.pallas_call(
        kernel,
        out_shape=jax.ShapeDtypeStruct((B, C), jnp.float32),
        in_specs=[pl.BlockSpec(memory_space=vmem) for _ in inputs],
        out_specs=pl.BlockSpec(memory_space=vmem),
        scratch_shapes=[
            pltpu.VMEM((T * BP, 4 * H), jnp.float32),  # hoisted, pre-scaled x@W_ih+b
            pltpu.VMEM((T * BP, H), jnp.float32),      # flat time-major LSTM output
        ],
    )(*inputs)


def init_params(key, *, vocab_size, embed_dim, hidden_size, linear_hidden_size,
                num_classes, kernel_num, kernel_sizes):
    ks = jax.random.split(key, 8 + 2 * len(kernel_sizes))
    s = 0.1
    E, H, LH, C, F = embed_dim, hidden_size, linear_hidden_size, num_classes, kernel_num

    params = {}
    params["embedding"] = s * jax.random.normal(ks[0], (vocab_size, E), jnp.float32)
    # LSTM params, pre-transposed; bias = b_ih + b_hh (equivalent semantics).
    # Gate column order is PyTorch's (i, f, g, o).
    params["w_ih"] = s * jax.random.normal(ks[1], (E, 4 * H), jnp.float32)
    params["w_hh"] = s * jax.random.normal(ks[2], (H, 4 * H), jnp.float32)
    params["b"] = (s * jax.random.normal(ks[3], (4 * H,), jnp.float32)).reshape(1, 4 * H)
    # Conv2d(1, F, (k, H)) weights stored as (k, F, H); bias (1, F).
    params["conv_w"] = []
    params["conv_b"] = []
    for i, k in enumerate(kernel_sizes):
        params["conv_w"].append(
            s * jax.random.normal(ks[4 + 2 * i], (k, F, H), jnp.float32))
        params["conv_b"].append(
            (s * jax.random.normal(ks[5 + 2 * i], (F,), jnp.float32)).reshape(1, F))
    # linear2: Linear(F*len(ks) -> LH), Linear(LH -> C); weights (in, out).
    nin = F * len(kernel_sizes)
    base = 4 + 2 * len(kernel_sizes)
    params["w1"] = s * jax.random.normal(ks[base + 0], (nin, LH), jnp.float32)
    params["b1"] = (s * jax.random.normal(ks[base + 1], (LH,), jnp.float32)).reshape(1, LH)
    params["w2"] = s * jax.random.normal(ks[base + 2], (LH, C), jnp.float32)
    params["b2"] = (s * jax.random.normal(ks[base + 3], (C,), jnp.float32)).reshape(1, C)
    return params


if __name__ == "__main__":
    # Small, module-consistent shapes.
    vocab_size = 50
    embed_dim = 16
    hidden_size = 32
    linear_hidden_size = 32
    num_classes = 5
    kernel_num = 8
    kernel_sizes = (2, 3, 4)
    B, T = 2, 8

    key = jax.random.PRNGKey(0)
    pkey, xkey = jax.random.split(key)
    params = init_params(
        pkey, vocab_size=vocab_size, embed_dim=embed_dim,
        hidden_size=hidden_size, linear_hidden_size=linear_hidden_size,
        num_classes=num_classes, kernel_num=kernel_num,
        kernel_sizes=kernel_sizes)

    x_tokens = jax.random.randint(xkey, (B, T), 0, vocab_size, dtype=jnp.int32)

    out = textlstm_forward(x_tokens, params, kernel_sizes=kernel_sizes)
    out = jax.block_until_ready(out)
    assert out.shape == (B, num_classes)
    assert bool(jnp.all(jnp.isfinite(out)))
    print("KERNEL_OK")
</pallas_src>

<mosaic_0001>
module attributes {stable_mosaic.version = 11 : i64} {
  func.func @_textlstm_kernel(%arg0: memref<64x1xi32, #tpu.memory_space<vmem>>, %arg1: memref<50x16xf32, #tpu.memory_space<vmem>>, %arg2: memref<16x128xf32, #tpu.memory_space<vmem>>, %arg3: memref<32x128xf32, #tpu.memory_space<vmem>>, %arg4: memref<1x128xf32, #tpu.memory_space<vmem>>, %arg5: memref<32x72xf32, #tpu.memory_space<vmem>>, %arg6: memref<1x24xf32, #tpu.memory_space<vmem>>, %arg7: memref<24x32xf32, #tpu.memory_space<vmem>>, %arg8: memref<1x32xf32, #tpu.memory_space<vmem>>, %arg9: memref<32x5xf32, #tpu.memory_space<vmem>>, %arg10: memref<1x5xf32, #tpu.memory_space<vmem>>, %arg11: memref<2x5xf32, #tpu.memory_space<vmem>>, %arg12: memref<64x128xf32, #tpu.memory_space<vmem>>, %arg13: memref<64x32xf32, #tpu.memory_space<vmem>>) attributes {dimension_semantics = [], scalar_prefetch = 0 : i64, scratch_operands = 2 : i64, tpu.core_type = #tpu.core_type<tc>} {
    %0 = tpu.iota {dimensions = array<i32: 1>} : vector<1x128xi32>
    %c64_i32 = arith.constant 64 : i32
    %1 = vector.broadcast %c64_i32 : i32 to vector<1x128xi32>
    %2 = arith.cmpi sge, %0, %1 : vector<1x128xi32>
    %c96_i32 = arith.constant 96 : i32
    %3 = vector.broadcast %c96_i32 : i32 to vector<1x128xi32>
    %4 = arith.cmpi slt, %0, %3 : vector<1x128xi32>
    %5 = arith.andi %2, %4 : vector<1x128xi1>
    %cst = arith.constant 1.000000e+00 : f32
    %cst_0 = arith.constant 5.000000e-01 : f32
    %6 = vector.broadcast %cst : f32 to vector<1x128xf32>
    %7 = vector.broadcast %cst_0 : f32 to vector<1x128xf32>
    %8 = arith.select %5, %6, %7 : vector<1x128xi1>, vector<1x128xf32>
    %9 = tpu.iota {dimensions = array<i32: 1>} : vector<64x50xi32>
    %c0 = arith.constant 0 : index
    %c0_1 = arith.constant 0 : index
    %10 = vector.load %arg0[%c0, %c0_1] : memref<64x1xi32, #tpu.memory_space<vmem>>, vector<64x1xi32>
    %11 = vector.broadcast %10 : vector<64x1xi32> to vector<64x50xi32>
    %12 = arith.cmpi eq, %9, %11 : vector<64x50xi32>
    %13 = arith.extui %12 : vector<64x50xi1> to vector<64x50xi32>
    %14 = arith.sitofp %13 : vector<64x50xi32> to vector<64x50xf32>
    %c0_2 = arith.constant 0 : index
    %c0_3 = arith.constant 0 : index
    %15 = vector.load %arg1[%c0_2, %c0_3] : memref<50x16xf32, #tpu.memory_space<vmem>>, vector<50x16xf32>
    %cst_4 = arith.constant dense<0.000000e+00> : vector<64x16xf32>
    %16 = tpu.matmul %14, %15, %cst_4 {dimension_numbers = #tpu.dot_dimension_numbers<[1], [0], [0], [1], [0, 0, 1, 1], [], []>} : vector<64x50xf32>, vector<50x16xf32>, vector<64x16xf32> -> vector<64x16xf32>
    %c0_5 = arith.constant 0 : index
    %c0_6 = arith.constant 0 : index
    %17 = vector.load %arg2[%c0_5, %c0_6] : memref<16x128xf32, #tpu.memory_space<vmem>>, vector<16x128xf32>
    %cst_7 = arith.constant dense<0.000000e+00> : vector<64x128xf32>
    %18 = tpu.matmul %16, %17, %cst_7 {dimension_numbers = #tpu.dot_dimension_numbers<[1], [0], [0], [1], [0, 0, 1, 1], [], []>} : vector<64x16xf32>, vector<16x128xf32>, vector<64x128xf32> -> vector<64x128xf32>
    %c0_8 = arith.constant 0 : index
    %c0_9 = arith.constant 0 : index
    %19 = vector.load %arg4[%c0_8, %c0_9] : memref<1x128xf32, #tpu.memory_space<vmem>>, vector<1x128xf32>
    %20 = vector.broadcast %19 : vector<1x128xf32> to vector<64x128xf32>
    %21 = arith.addf %18, %20 : vector<64x128xf32>
    %22 = vector.broadcast %8 : vector<1x128xf32> to vector<64x128xf32>
    %23 = arith.mulf %21, %22 : vector<64x128xf32>
    %c0_10 = arith.constant 0 : index
    %c0_11 = arith.constant 0 : index
    %24 = vector.load %arg12[%c0_10, %c0_11] : memref<64x128xf32, #tpu.memory_space<vmem>>, vector<64x128xf32>
    tpu.vector_store %arg12[%c0_10, %c0_11], %23 {strides = array<i32>} : memref<64x128xf32, #tpu.memory_space<vmem>>, vector<64x128xf32>,
    %c0_12 = arith.constant 0 : index
    %c0_13 = arith.constant 0 : index
    %25 = vector.load %arg3[%c0_12, %c0_13] : memref<32x128xf32, #tpu.memory_space<vmem>>, vector<32x128xf32>
    %26 = vector.broadcast %8 : vector<1x128xf32> to vector<32x128xf32>
    %27 = arith.mulf %25, %26 : vector<32x128xf32>
    %28 = arith.truncf %27 : vector<32x128xf32> to vector<32x128xbf16>
    %cst_14 = arith.constant 0.000000e+00 : f32
    %29 = vector.broadcast %cst_14 : f32 to vector<8x32xf32>
    %cst_15 = arith.constant 0.000000e+00 : f32
    %30 = vector.broadcast %cst_15 : f32 to vector<8x32xf32>
    %c0_16 = arith.constant 0 : index
    %c0_17 = arith.constant 0 : index
    %31 = vector.load %arg12[%c0_16, %c0_17] : memref<64x128xf32, #tpu.memory_space<vmem>>, vector<8x128xf32>
    %32 = arith.truncf %29 : vector<8x32xf32> to vector<8x32xbf16>
    %cst_18 = arith.constant dense<0.000000e+00> : vector<8x128xf32>
    %33 = tpu.matmul %32, %28, %cst_18 {dimension_numbers = #tpu.dot_dimension_numbers<[1], [0], [0], [1], [0, 0, 1, 1], [], []>} : vector<8x32xbf16>, vector<32x128xbf16>, vector<8x128xf32> -> vector<8x128xf32>
    %34 = arith.addf %31, %33 : vector<8x128xf32>
    %35 = math.tanh %34 : vector<8x128xf32>
    %36 = vector.extract_strided_slice %35 {offsets = [0, 0], sizes = [8, 32], strides = [1, 1]} : vector<8x128xf32> to vector<8x32xf32>
    %cst_19 = arith.constant 5.000000e-01 : f32
    %37 = vector.broadcast %cst_19 : f32 to vector<8x32xf32>
    %38 = arith.mulf %37, %36 : vector<8x32xf32>
    %cst_20 = arith.constant 5.000000e-01 : f32
    %39 = vector.broadcast %cst_20 : f32 to vector<8x32xf32>
    %40 = arith.addf %38, %39 : vector<8x32xf32>
    %41 = vector.extract_strided_slice %35 {offsets = [0, 32], sizes = [8, 32], strides = [1, 1]} : vector<8x128xf32> to vector<8x32xf32>
    %cst_21 = arith.constant 5.000000e-01 : f32
    %42 = vector.broadcast %cst_21 : f32 to vector<8x32xf32>
    %43 = arith.mulf %42, %41 : vector<8x32xf32>
    %cst_22 = arith.constant 5.000000e-01 : f32
    %44 = vector.broadcast %cst_22 : f32 to vector<8x32xf32>
    %45 = arith.addf %43, %44 : vector<8x32xf32>
    %46 = vector.extract_strided_slice %35 {offsets = [0, 64], sizes = [8, 32], strides = [1, 1]} : vector<8x128xf32> to vector<8x32xf32>
    %47 = vector.extract_strided_slice %35 {offsets = [0, 96], sizes = [8, 32], strides = [1, 1]} : vector<8x128xf32> to vector<8x32xf32>
    %cst_23 = arith.constant 5.000000e-01 : f32
    %48 = vector.broadcast %cst_23 : f32 to vector<8x32xf32>
    %49 = arith.mulf %48, %47 : vector<8x32xf32>
    %cst_24 = arith.constant 5.000000e-01 : f32
    %50 = vector.broadcast %cst_24 : f32 to vector<8x32xf32>
    %51 = arith.addf %49, %50 : vector<8x32xf32>
    %52 = arith.mulf %45, %30 : vector<8x32xf32>
    %53 = arith.mulf %40, %46 : vector<8x32xf32>
    %54 = arith.addf %52, %53 : vector<8x32xf32>
    %55 = math.tanh %54 : vector<8x32xf32>
    %56 = arith.mulf %51, %55 : vector<8x32xf32>
    %c0_25 = arith.constant 0 : index
    %c0_26 = arith.constant 0 : index
    %57 = vector.load %arg13[%c0_25, %c0_26] : memref<64x32xf32, #tpu.memory_space<vmem>>, vector<8x32xf32>
    tpu.vector_store %arg13[%c0_25, %c0_26], %56 {strides = array<i32>} : memref<64x32xf32, #tpu.memory_space<vmem>>, vector<8x32xf32>,
    %c8 = arith.constant 8 : index
    %c0_27 = arith.constant 0 : index
    %58 = vector.load %arg12[%c8, %c0_27] : memref<64x128xf32, #tpu.memory_space<vmem>>, vector<8x128xf32>
    %59 = arith.truncf %56 : vector<8x32xf32> to vector<8x32xbf16>
    %cst_28 = arith.constant dense<0.000000e+00> : vector<8x128xf32>
    %60 = tpu.matmul %59, %28, %cst_28 {dimension_numbers = #tpu.dot_dimension_numbers<[1], [0], [0], [1], [0, 0, 1, 1], [], []>} : vector<8x32xbf16>, vector<32x128xbf16>, vector<8x128xf32> -> vector<8x128xf32>
    %61 = arith.addf %58, %60 : vector<8x128xf32>
    %62 = math.tanh %61 : vector<8x128xf32>
    %63 = vector.extract_strided_slice %62 {offsets = [0, 0], sizes = [8, 32], strides = [1, 1]} : vector<8x128xf32> to vector<8x32xf32>
    %cst_29 = arith.constant 5.000000e-01 : f32
    %64 = vector.broadcast %cst_29 : f32 to vector<8x32xf32>
    %65 = arith.mulf %64, %63 : vector<8x32xf32>
    %cst_30 = arith.constant 5.000000e-01 : f32
    %66 = vector.broadcast %cst_30 : f32 to vector<8x32xf32>
    %67 = arith.addf %65, %66 : vector<8x32xf32>
    %68 = vector.extract_strided_slice %62 {offsets = [0, 32], sizes = [8, 32], strides = [1, 1]} : vector<8x128xf32> to vector<8x32xf32>
    %cst_31 = arith.constant 5.000000e-01 : f32
    %69 = vector.broadcast %cst_31 : f32 to vector<8x32xf32>
    %70 = arith.mulf %69, %68 : vector<8x32xf32>
    %cst_32 = arith.constant 5.000000e-01 : f32
    %71 = vector.broadcast %cst_32 : f32 to vector<8x32xf32>
    %72 = arith.addf %70, %71 : vector<8x32xf32>
    %73 = vector.extract_strided_slice %62 {offsets = [0, 64], sizes = [8, 32], strides = [1, 1]} : vector<8x128xf32> to vector<8x32xf32>
    %74 = vector.extract_strided_slice %62 {offsets = [0, 96], sizes = [8, 32], strides = [1, 1]} : vector<8x128xf32> to vector<8x32xf32>
    %cst_33 = arith.constant 5.000000e-01 : f32
    %75 = vector.broadcast %cst_33 : f32 to vector<8x32xf32>
    %76 = arith.mulf %75, %74 : vector<8x32xf32>
    %cst_34 = arith.constant 5.000000e-01 : f32
    %77 = vector.broadcast %cst_34 : f32 to vector<8x32xf32>
    %78 = arith.addf %76, %77 : vector<8x32xf32>
    %79 = arith.mulf %72, %54 : vector<8x32xf32>
    %80 = arith.mulf %67, %73 : vector<8x32xf32>
    %81 = arith.addf %79, %80 : vector<8x32xf32>
    %82 = math.tanh %81 : vector<8x32xf32>
    %83 = arith.mulf %78, %82 : vector<8x32xf32>
    %c8_35 = arith.constant 8 : index
    %c0_36 = arith.constant 0 : index
    %84 = vector.load %arg13[%c8_35, %c0_36] : memref<64x32xf32, #tpu.memory_space<vmem>>, vector<8x32xf32>
    tpu.vector_store %arg13[%c8_35, %c0_36], %83 {strides = array<i32>} : memref<64x32xf32, #tpu.memory_space<vmem>>, vector<8x32xf32>,
    %c16 = arith.constant 16 : index
    %c0_37 = arith.constant 0 : index
    %85 = vector.load %arg12[%c16, %c0_37] : memref<64x128xf32, #tpu.memory_space<vmem>>, vector<8x128xf32>
    %86 = arith.truncf %83 : vector<8x32xf32> to vector<8x32xbf16>
    %cst_38 = arith.constant dense<0.000000e+00> : vector<8x128xf32>
    %87 = tpu.matmul %86, %28, %cst_38 {dimension_numbers = #tpu.dot_dimension_numbers<[1], [0], [0], [1], [0, 0, 1, 1], [], []>} : vector<8x32xbf16>, vector<32x128xbf16>, vector<8x128xf32> -> vector<8x128xf32>
    %88 = arith.addf %85, %87 : vector<8x128xf32>
    %89 = math.tanh %88 : vector<8x128xf32>
    %90 = vector.extract_strided_slice %89 {offsets = [0, 0], sizes = [8, 32], strides = [1, 1]} : vector<8x128xf32> to vector<8x32xf32>
    %cst_39 = arith.constant 5.000000e-01 : f32
    %91 = vector.broadcast %cst_39 : f32 to vector<8x32xf32>
    %92 = arith.mulf %91, %90 : vector<8x32xf32>
    %cst_40 = arith.constant 5.000000e-01 : f32
    %93 = vector.broadcast %cst_40 : f32 to vector<8x32xf32>
    %94 = arith.addf %92, %93 : vector<8x32xf32>
    %95 = vector.extract_strided_slice %89 {offsets = [0, 32], sizes = [8, 32], strides = [1, 1]} : vector<8x128xf32> to vector<8x32xf32>
    %cst_41 = arith.constant 5.000000e-01 : f32
    %96 = vector.broadcast %cst_41 : f32 to vector<8x32xf32>
    %97 = arith.mulf %96, %95 : vector<8x32xf32>
    %cst_42 = arith.constant 5.000000e-01 : f32
    %98 = vector.broadcast %cst_42 : f32 to vector<8x32xf32>
    %99 = arith.addf %97, %98 : vector<8x32xf32>
    %100 = vector.extract_strided_slice %89 {offsets = [0, 64], sizes = [8, 32], strides = [1, 1]} : vector<8x128xf32> to vector<8x32xf32>
    %101 = vector.extract_strided_slice %89 {offsets = [0, 96], sizes = [8, 32], strides = [1, 1]} : vector<8x128xf32> to vector<8x32xf32>
    %cst_43 = arith.constant 5.000000e-01 : f32
    %102 = vector.broadcast %cst_43 : f32 to vector<8x32xf32>
    %103 = arith.mulf %102, %101 : vector<8x32xf32>
    %cst_44 = arith.constant 5.000000e-01 : f32
    %104 = vector.broadcast %cst_44 : f32 to vector<8x32xf32>
    %105 = arith.addf %103, %104 : vector<8x32xf32>
    %106 = arith.mulf %99, %81 : vector<8x32xf32>
    %107 = arith.mulf %94, %100 : vector<8x32xf32>
    %108 = arith.addf %106, %107 : vector<8x32xf32>
    %109 = math.tanh %108 : vector<8x32xf32>
    %110 = arith.mulf %105, %109 : vector<8x32xf32>
    %c16_45 = arith.constant 16 : index
    %c0_46 = arith.constant 0 : index
    %111 = vector.load %arg13[%c16_45, %c0_46] : memref<64x32xf32, #tpu.memory_space<vmem>>, vector<8x32xf32>
    tpu.vector_store %arg13[%c16_45, %c0_46], %110 {strides = array<i32>} : memref<64x32xf32, #tpu.memory_space<vmem>>, vector<8x32xf32>,
    %c24 = arith.constant 24 : index
    %c0_47 = arith.constant 0 : index
    %112 = vector.load %arg12[%c24, %c0_47] : memref<64x128xf32, #tpu.memory_space<vmem>>, vector<8x128xf32>
    %113 = arith.truncf %110 : vector<8x32xf32> to vector<8x32xbf16>
    %cst_48 = arith.constant dense<0.000000e+00> : vector<8x128xf32>
    %114 = tpu.matmul %113, %28, %cst_48 {dimension_numbers = #tpu.dot_dimension_numbers<[1], [0], [0], [1], [0, 0, 1, 1], [], []>} : vector<8x32xbf16>, vector<32x128xbf16>, vector<8x128xf32> -> vector<8x128xf32>
    %115 = arith.addf %112, %114 : vector<8x128xf32>
    %116 = math.tanh %115 : vector<8x128xf32>
    %117 = vector.extract_strided_slice %116 {offsets = [0, 0], sizes = [8, 32], strides = [1, 1]} : vector<8x128xf32> to vector<8x32xf32>
    %cst_49 = arith.constant 5.000000e-01 : f32
    %118 = vector.broadcast %cst_49 : f32 to vector<8x32xf32>
    %119 = arith.mulf %118, %117 : vector<8x32xf32>
    %cst_50 = arith.constant 5.000000e-01 : f32
    %120 = vector.broadcast %cst_50 : f32 to vector<8x32xf32>
    %121 = arith.addf %119, %120 : vector<8x32xf32>
    %122 = vector.extract_strided_slice %116 {offsets = [0, 32], sizes = [8, 32], strides = [1, 1]} : vector<8x128xf32> to vector<8x32xf32>
    %cst_51 = arith.constant 5.000000e-01 : f32
    %123 = vector.broadcast %cst_51 : f32 to vector<8x32xf32>
    %124 = arith.mulf %123, %122 : vector<8x32xf32>
    %cst_52 = arith.constant 5.000000e-01 : f32
    %125 = vector.broadcast %cst_52 : f32 to vector<8x32xf32>
    %126 = arith.addf %124, %125 : vector<8x32xf32>
    %127 = vector.extract_strided_slice %116 {offsets = [0, 64], sizes = [8, 32], strides = [1, 1]} : vector<8x128xf32> to vector<8x32xf32>
    %128 = vector.extract_strided_slice %116 {offsets = [0, 96], sizes = [8, 32], strides = [1, 1]} : vector<8x128xf32> to vector<8x32xf32>
    %cst_53 = arith.constant 5.000000e-01 : f32
    %129 = vector.broadcast %cst_53 : f32 to vector<8x32xf32>
    %130 = arith.mulf %129, %128 : vector<8x32xf32>
    %cst_54 = arith.constant 5.000000e-01 : f32
    %131 = vector.broadcast %cst_54 : f32 to vector<8x32xf32>
    %132 = arith.addf %130, %131 : vector<8x32xf32>
    %133 = arith.mulf %126, %108 : vector<8x32xf32>
    %134 = arith.mulf %121, %127 : vector<8x32xf32>
    %135 = arith.addf %133, %134 : vector<8x32xf32>
    %136 = math.tanh %135 : vector<8x32xf32>
    %137 = arith.mulf %132, %136 : vector<8x32xf32>
    %c24_55 = arith.constant 24 : index
    %c0_56 = arith.constant 0 : index
    %138 = vector.load %arg13[%c24_55, %c0_56] : memref<64x32xf32, #tpu.memory_space<vmem>>, vector<8x32xf32>
    tpu.vector_store %arg13[%c24_55, %c0_56], %137 {strides = array<i32>} : memref<64x32xf32, #tpu.memory_space<vmem>>, vector<8x32xf32>,
    %c32 = arith.constant 32 : index
    %c0_57 = arith.constant 0 : index
    %139 = vector.load %arg12[%c32, %c0_57] : memref<64x128xf32, #tpu.memory_space<vmem>>, vector<8x128xf32>
    %140 = arith.truncf %137 : vector<8x32xf32> to vector<8x32xbf16>
    %cst_58 = arith.constant dense<0.000000e+00> : vector<8x128xf32>
    %141 = tpu.matmul %140, %28, %cst_58 {dimension_numbers = #tpu.dot_dimension_numbers<[1], [0], [0], [1], [0, 0, 1, 1], [], []>} : vector<8x32xbf16>, vector<32x128xbf16>, vector<8x128xf32> -> vector<8x128xf32>
    %142 = arith.addf %139, %141 : vector<8x128xf32>
    %143 = math.tanh %142 : vector<8x128xf32>
    %144 = vector.extract_strided_slice %143 {offsets = [0, 0], sizes = [8, 32], strides = [1, 1]} : vector<8x128xf32> to vector<8x32xf32>
    %cst_59 = arith.constant 5.000000e-01 : f32
    %145 = vector.broadcast %cst_59 : f32 to vector<8x32xf32>
    %146 = arith.mulf %145, %144 : vector<8x32xf32>
    %cst_60 = arith.constant 5.000000e-01 : f32
    %147 = vector.broadcast %cst_60 : f32 to vector<8x32xf32>
    %148 = arith.addf %146, %147 : vector<8x32xf32>
    %149 = vector.extract_strided_slice %143 {offsets = [0, 32], sizes = [8, 32], strides = [1, 1]} : vector<8x128xf32> to vector<8x32xf32>
    %cst_61 = arith.constant 5.000000e-01 : f32
    %150 = vector.broadcast %cst_61 : f32 to vector<8x32xf32>
    %151 = arith.mulf %150, %149 : vector<8x32xf32>
    %cst_62 = arith.constant 5.000000e-01 : f32
    %152 = vector.broadcast %cst_62 : f32 to vector<8x32xf32>
    %153 = arith.addf %151, %152 : vector<8x32xf32>
    %154 = vector.extract_strided_slice %143 {offsets = [0, 64], sizes = [8, 32], strides = [1, 1]} : vector<8x128xf32> to vector<8x32xf32>
    %155 = vector.extract_strided_slice %143 {offsets = [0, 96], sizes = [8, 32], strides = [1, 1]} : vector<8x128xf32> to vector<8x32xf32>
    %cst_63 = arith.constant 5.000000e-01 : f32
    %156 = vector.broadcast %cst_63 : f32 to vector<8x32xf32>
    %157 = arith.mulf %156, %155 : vector<8x32xf32>
    %cst_64 = arith.constant 5.000000e-01 : f32
    %158 = vector.broadcast %cst_64 : f32 to vector<8x32xf32>
    %159 = arith.addf %157, %158 : vector<8x32xf32>
    %160 = arith.mulf %153, %135 : vector<8x32xf32>
    %161 = arith.mulf %148, %154 : vector<8x32xf32>
    %162 = arith.addf %160, %161 : vector<8x32xf32>
    %163 = math.tanh %162 : vector<8x32xf32>
    %164 = arith.mulf %159, %163 : vector<8x32xf32>
    %c32_65 = arith.constant 32 : index
    %c0_66 = arith.constant 0 : index
    %165 = vector.load %arg13[%c32_65, %c0_66] : memref<64x32xf32, #tpu.memory_space<vmem>>, vector<8x32xf32>
    tpu.vector_store %arg13[%c32_65, %c0_66], %164 {strides = array<i32>} : memref<64x32xf32, #tpu.memory_space<vmem>>, vector<8x32xf32>,
    %c40 = arith.constant 40 : index
    %c0_67 = arith.constant 0 : index
    %166 = vector.load %arg12[%c40, %c0_67] : memref<64x128xf32, #tpu.memory_space<vmem>>, vector<8x128xf32>
    %167 = arith.truncf %164 : vector<8x32xf32> to vector<8x32xbf16>
    %cst_68 = arith.constant dense<0.000000e+00> : vector<8x128xf32>
    %168 = tpu.matmul %167, %28, %cst_68 {dimension_numbers = #tpu.dot_dimension_numbers<[1], [0], [0], [1], [0, 0, 1, 1], [], []>} : vector<8x32xbf16>, vector<32x128xbf16>, vector<8x128xf32> -> vector<8x128xf32>
    %169 = arith.addf %166, %168 : vector<8x128xf32>
    %170 = math.tanh %169 : vector<8x128xf32>
    %171 = vector.extract_strided_slice %170 {offsets = [0, 0], sizes = [8, 32], strides = [1, 1]} : vector<8x128xf32> to vector<8x32xf32>
    %cst_69 = arith.constant 5.000000e-01 : f32
    %172 = vector.broadcast %cst_69 : f32 to vector<8x32xf32>
    %173 = arith.mulf %172, %171 : vector<8x32xf32>
    %cst_70 = arith.constant 5.000000e-01 : f32
    %174 = vector.broadcast %cst_70 : f32 to vector<8x32xf32>
    %175 = arith.addf %173, %174 : vector<8x32xf32>
    %176 = vector.extract_strided_slice %170 {offsets = [0, 32], sizes = [8, 32], strides = [1, 1]} : vector<8x128xf32> to vector<8x32xf32>
    %cst_71 = arith.constant 5.000000e-01 : f32
    %177 = vector.broadcast %cst_71 : f32 to vector<8x32xf32>
    %178 = arith.mulf %177, %176 : vector<8x32xf32>
    %cst_72 = arith.constant 5.000000e-01 : f32
    %179 = vector.broadcast %cst_72 : f32 to vector<8x32xf32>
    %180 = arith.addf %178, %179 : vector<8x32xf32>
    %181 = vector.extract_strided_slice %170 {offsets = [0, 64], sizes = [8, 32], strides = [1, 1]} : vector<8x128xf32> to vector<8x32xf32>
    %182 = vector.extract_strided_slice %170 {offsets = [0, 96], sizes = [8, 32], strides = [1, 1]} : vector<8x128xf32> to vector<8x32xf32>
    %cst_73 = arith.constant 5.000000e-01 : f32
    %183 = vector.broadcast %cst_73 : f32 to vector<8x32xf32>
    %184 = arith.mulf %183, %182 : vector<8x32xf32>
    %cst_74 = arith.constant 5.000000e-01 : f32
    %185 = vector.broadcast %cst_74 : f32 to vector<8x32xf32>
    %186 = arith.addf %184, %185 : vector<8x32xf32>
    %187 = arith.mulf %180, %162 : vector<8x32xf32>
    %188 = arith.mulf %175, %181 : vector<8x32xf32>
    %189 = arith.addf %187, %188 : vector<8x32xf32>
    %190 = math.tanh %189 : vector<8x32xf32>
    %191 = arith.mulf %186, %190 : vector<8x32xf32>
    %c40_75 = arith.constant 40 : index
    %c0_76 = arith.constant 0 : index
    %192 = vector.load %arg13[%c40_75, %c0_76] : memref<64x32xf32, #tpu.memory_space<vmem>>, vector<8x32xf32>
    tpu.vector_store %arg13[%c40_75, %c0_76], %191 {strides = array<i32>} : memref<64x32xf32, #tpu.memory_space<vmem>>, vector<8x32xf32>,
    %c48 = arith.constant 48 : index
    %c0_77 = arith.constant 0 : index
    %193 = vector.load %arg12[%c48, %c0_77] : memref<64x128xf32, #tpu.memory_space<vmem>>, vector<8x128xf32>
    %194 = arith.truncf %191 : vector<8x32xf32> to vector<8x32xbf16>
    %cst_78 = arith.constant dense<0.000000e+00> : vector<8x128xf32>
    %195 = tpu.matmul %194, %28, %cst_78 {dimension_numbers = #tpu.dot_dimension_numbers<[1], [0], [0], [1], [0, 0, 1, 1], [], []>} : vector<8x32xbf16>, vector<32x128xbf16>, vector<8x128xf32> -> vector<8x128xf32>
    %196 = arith.addf %193, %195 : vector<8x128xf32>
    %197 = math.tanh %196 : vector<8x128xf32>
    %198 = vector.extract_strided_slice %197 {offsets = [0, 0], sizes = [8, 32], strides = [1, 1]} : vector<8x128xf32> to vector<8x32xf32>
    %cst_79 = arith.constant 5.000000e-01 : f32
    %199 = vector.broadcast %cst_79 : f32 to vector<8x32xf32>
    %200 = arith.mulf %199, %198 : vector<8x32xf32>
    %cst_80 = arith.constant 5.000000e-01 : f32
    %201 = vector.broadcast %cst_80 : f32 to vector<8x32xf32>
    %202 = arith.addf %200, %201 : vector<8x32xf32>
    %203 = vector.extract_strided_slice %197 {offsets = [0, 32], sizes = [8, 32], strides = [1, 1]} : vector<8x128xf32> to vector<8x32xf32>
    %cst_81 = arith.constant 5.000000e-01 : f32
    %204 = vector.broadcast %cst_81 : f32 to vector<8x32xf32>
    %205 = arith.mulf %204, %203 : vector<8x32xf32>
    %cst_82 = arith.constant 5.000000e-01 : f32
    %206 = vector.broadcast %cst_82 : f32 to vector<8x32xf32>
    %207 = arith.addf %205, %206 : vector<8x32xf32>
    %208 = vector.extract_strided_slice %197 {offsets = [0, 64], sizes = [8, 32], strides = [1, 1]} : vector<8x128xf32> to vector<8x32xf32>
    %209 = vector.extract_strided_slice %197 {offsets = [0, 96], sizes = [8, 32], strides = [1, 1]} : vector<8x128xf32> to vector<8x32xf32>
    %cst_83 = arith.constant 5.000000e-01 : f32
    %210 = vector.broadcast %cst_83 : f32 to vector<8x32xf32>
    %211 = arith.mulf %210, %209 : vector<8x32xf32>
    %cst_84 = arith.constant 5.000000e-01 : f32
    %212 = vector.broadcast %cst_84 : f32 to vector<8x32xf32>
    %213 = arith.addf %211, %212 : vector<8x32xf32>
    %214 = arith.mulf %207, %189 : vector<8x32xf32>
    %215 = arith.mulf %202, %208 : vector<8x32xf32>
    %216 = arith.addf %214, %215 : vector<8x32xf32>
    %217 = math.tanh %216 : vector<8x32xf32>
    %218 = arith.mulf %213, %217 : vector<8x32xf32>
    %c48_85 = arith.constant 48 : index
    %c0_86 = arith.constant 0 : index
    %219 = vector.load %arg13[%c48_85, %c0_86] : memref<64x32xf32, #tpu.memory_space<vmem>>, vector<8x32xf32>
    tpu.vector_store %arg13[%c48_85, %c0_86], %218 {strides = array<i32>} : memref<64x32xf32, #tpu.memory_space<vmem>>, vector<8x32xf32>,
    %c56 = arith.constant 56 : index
    %c0_87 = arith.constant 0 : index
    %220 = vector.load %arg12[%c56, %c0_87] : memref<64x128xf32, #tpu.memory_space<vmem>>, vector<8x128xf32>
    %221 = arith.truncf %218 : vector<8x32xf32> to vector<8x32xbf16>
    %cst_88 = arith.constant dense<0.000000e+00> : vector<8x128xf32>
    %222 = tpu.matmul %221, %28, %cst_88 {dimension_numbers = #tpu.dot_dimension_numbers<[1], [0], [0], [1], [0, 0, 1, 1], [], []>} : vector<8x32xbf16>, vector<32x128xbf16>, vector<8x128xf32> -> vector<8x128xf32>
    %223 = arith.addf %220, %222 : vector<8x128xf32>
    %224 = math.tanh %223 : vector<8x128xf32>
    %225 = vector.extract_strided_slice %224 {offsets = [0, 0], sizes = [8, 32], strides = [1, 1]} : vector<8x128xf32> to vector<8x32xf32>
    %cst_89 = arith.constant 5.000000e-01 : f32
    %226 = vector.broadcast %cst_89 : f32 to vector<8x32xf32>
    %227 = arith.mulf %226, %225 : vector<8x32xf32>
    %cst_90 = arith.constant 5.000000e-01 : f32
    %228 = vector.broadcast %cst_90 : f32 to vector<8x32xf32>
    %229 = arith.addf %227, %228 : vector<8x32xf32>
    %230 = vector.extract_strided_slice %224 {offsets = [0, 32], sizes = [8, 32], strides = [1, 1]} : vector<8x128xf32> to vector<8x32xf32>
    %cst_91 = arith.constant 5.000000e-01 : f32
    %231 = vector.broadcast %cst_91 : f32 to vector<8x32xf32>
    %232 = arith.mulf %231, %230 : vector<8x32xf32>
    %cst_92 = arith.constant 5.000000e-01 : f32
    %233 = vector.broadcast %cst_92 : f32 to vector<8x32xf32>
    %234 = arith.addf %232, %233 : vector<8x32xf32>
    %235 = vector.extract_strided_slice %224 {offsets = [0, 64], sizes = [8, 32], strides = [1, 1]} : vector<8x128xf32> to vector<8x32xf32>
    %236 = vector.extract_strided_slice %224 {offsets = [0, 96], sizes = [8, 32], strides = [1, 1]} : vector<8x128xf32> to vector<8x32xf32>
    %cst_93 = arith.constant 5.000000e-01 : f32
    %237 = vector.broadcast %cst_93 : f32 to vector<8x32xf32>
    %238 = arith.mulf %237, %236 : vector<8x32xf32>
    %cst_94 = arith.constant 5.000000e-01 : f32
    %239 = vector.broadcast %cst_94 : f32 to vector<8x32xf32>
    %240 = arith.addf %238, %239 : vector<8x32xf32>
    %241 = arith.mulf %234, %216 : vector<8x32xf32>
    %242 = arith.mulf %229, %235 : vector<8x32xf32>
    %243 = arith.addf %241, %242 : vector<8x32xf32>
    %244 = math.tanh %243 : vector<8x32xf32>
    %245 = arith.mulf %240, %244 : vector<8x32xf32>
    %c56_95 = arith.constant 56 : index
    %c0_96 = arith.constant 0 : index
    %246 = vector.load %arg13[%c56_95, %c0_96] : memref<64x32xf32, #tpu.memory_space<vmem>>, vector<8x32xf32>
    tpu.vector_store %arg13[%c56_95, %c0_96], %245 {strides = array<i32>} : memref<64x32xf32, #tpu.memory_space<vmem>>, vector<8x32xf32>,
    %c0_97 = arith.constant 0 : index
    %c0_98 = arith.constant 0 : index
    %247 = vector.load %arg13[%c0_97, %c0_98] : memref<64x32xf32, #tpu.memory_space<vmem>>, vector<64x32xf32>
    %c0_99 = arith.constant 0 : index
    %c0_100 = arith.constant 0 : index
    %248 = vector.load %arg5[%c0_99, %c0_100] : memref<32x72xf32, #tpu.memory_space<vmem>>, vector<32x72xf32>
    %cst_101 = arith.constant dense<0.000000e+00> : vector<64x72xf32>
    %249 = tpu.matmul %247, %248, %cst_101 {dimension_numbers = #tpu.dot_dimension_numbers<[1], [0], [0], [1], [0, 0, 1, 1], [], []>} : vector<64x32xf32>, vector<32x72xf32>, vector<64x72xf32> -> vector<64x72xf32>
    %250 = vector.extract_strided_slice %249 {offsets = [0, 0], sizes = [56, 8], strides = [1, 1]} : vector<64x72xf32> to vector<56x8xf32>
    %251 = vector.extract_strided_slice %249 {offsets = [8, 8], sizes = [56, 8], strides = [1, 1]} : vector<64x72xf32> to vector<56x8xf32>
    %252 = arith.addf %250, %251 : vector<56x8xf32>
    %253 = vector.extract_strided_slice %252 {offsets = [0, 0], sizes = [8, 8], strides = [1, 1]} : vector<56x8xf32> to vector<8x8xf32>
    %254 = vector.extract_strided_slice %252 {offsets = [8, 0], sizes = [8, 8], strides = [1, 1]} : vector<56x8xf32> to vector<8x8xf32>
    %255 = arith.maximumf %253, %254 : vector<8x8xf32>
    %256 = vector.extract_strided_slice %252 {offsets = [16, 0], sizes = [8, 8], strides = [1, 1]} : vector<56x8xf32> to vector<8x8xf32>
    %257 = arith.maximumf %255, %256 : vector<8x8xf32>
    %258 = vector.extract_strided_slice %252 {offsets = [24, 0], sizes = [8, 8], strides = [1, 1]} : vector<56x8xf32> to vector<8x8xf32>
    %259 = arith.maximumf %257, %258 : vector<8x8xf32>
    %260 = vector.extract_strided_slice %252 {offsets = [32, 0], sizes = [8, 8], strides = [1, 1]} : vector<56x8xf32> to vector<8x8xf32>
    %261 = arith.maximumf %259, %260 : vector<8x8xf32>
    %262 = vector.extract_strided_slice %252 {offsets = [40, 0], sizes = [8, 8], strides = [1, 1]} : vector<56x8xf32> to vector<8x8xf32>
    %263 = arith.maximumf %261, %262 : vector<8x8xf32>
    %264 = vector.extract_strided_slice %252 {offsets = [48, 0], sizes = [8, 8], strides = [1, 1]} : vector<56x8xf32> to vector<8x8xf32>
    %265 = arith.maximumf %263, %264 : vector<8x8xf32>
    %266 = vector.extract_strided_slice %249 {offsets = [0, 16], sizes = [48, 8], strides = [1, 1]} : vector<64x72xf32> to vector<48x8xf32>
    %267 = vector.extract_strided_slice %249 {offsets = [8, 24], sizes = [48, 8], strides = [1, 1]} : vector<64x72xf32> to vector<48x8xf32>
    %268 = arith.addf %266, %267 : vector<48x8xf32>
    %269 = vector.extract_strided_slice %249 {offsets = [16, 32], sizes = [48, 8], strides = [1, 1]} : vector<64x72xf32> to vector<48x8xf32>
    %270 = arith.addf %268, %269 : vector<48x8xf32>
    %271 = vector.extract_strided_slice %270 {offsets = [0, 0], sizes = [8, 8], strides = [1, 1]} : vector<48x8xf32> to vector<8x8xf32>
    %272 = vector.extract_strided_slice %270 {offsets = [8, 0], sizes = [8, 8], strides = [1, 1]} : vector<48x8xf32> to vector<8x8xf32>
    %273 = arith.maximumf %271, %272 : vector<8x8xf32>
    %274 = vector.extract_strided_slice %270 {offsets = [16, 0], sizes = [8, 8], strides = [1, 1]} : vector<48x8xf32> to vector<8x8xf32>
    %275 = arith.maximumf %273, %274 : vector<8x8xf32>
    %276 = vector.extract_strided_slice %270 {offsets = [24, 0], sizes = [8, 8], strides = [1, 1]} : vector<48x8xf32> to vector<8x8xf32>
    %277 = arith.maximumf %275, %276 : vector<8x8xf32>
    %278 = vector.extract_strided_slice %270 {offsets = [32, 0], sizes = [8, 8], strides = [1, 1]} : vector<48x8xf32> to vector<8x8xf32>
    %279 = arith.maximumf %277, %278 : vector<8x8xf32>
    %280 = vector.extract_strided_slice %270 {offsets = [40, 0], sizes = [8, 8], strides = [1, 1]} : vector<48x8xf32> to vector<8x8xf32>
    %281 = arith.maximumf %279, %280 : vector<8x8xf32>
    %282 = vector.extract_strided_slice %249 {offsets = [0, 40], sizes = [40, 8], strides = [1, 1]} : vector<64x72xf32> to vector<40x8xf32>
    %283 = vector.extract_strided_slice %249 {offsets = [8, 48], sizes = [40, 8], strides = [1, 1]} : vector<64x72xf32> to vector<40x8xf32>
    %284 = arith.addf %282, %283 : vector<40x8xf32>
    %285 = vector.extract_strided_slice %249 {offsets = [16, 56], sizes = [40, 8], strides = [1, 1]} : vector<64x72xf32> to vector<40x8xf32>
    %286 = arith.addf %284, %285 : vector<40x8xf32>
    %287 = vector.extract_strided_slice %249 {offsets = [24, 64], sizes = [40, 8], strides = [1, 1]} : vector<64x72xf32> to vector<40x8xf32>
    %288 = arith.addf %286, %287 : vector<40x8xf32>
    %289 = vector.extract_strided_slice %288 {offsets = [0, 0], sizes = [8, 8], strides = [1, 1]} : vector<40x8xf32> to vector<8x8xf32>
    %290 = vector.extract_strided_slice %288 {offsets = [8, 0], sizes = [8, 8], strides = [1, 1]} : vector<40x8xf32> to vector<8x8xf32>
    %291 = arith.maximumf %289, %290 : vector<8x8xf32>
    %292 = vector.extract_strided_slice %288 {offsets = [16, 0], sizes = [8, 8], strides = [1, 1]} : vector<40x8xf32> to vector<8x8xf32>
    %293 = arith.maximumf %291, %292 : vector<8x8xf32>
    %294 = vector.extract_strided_slice %288 {offsets = [24, 0], sizes = [8, 8], strides = [1, 1]} : vector<40x8xf32> to vector<8x8xf32>
    %295 = arith.maximumf %293, %294 : vector<8x8xf32>
    %296 = vector.extract_strided_slice %288 {offsets = [32, 0], sizes = [8, 8], strides = [1, 1]} : vector<40x8xf32> to vector<8x8xf32>
    %297 = arith.maximumf %295, %296 : vector<8x8xf32>
    %298 = tpu.concatenate %265, %281, %297 in 1 : vector<8x8xf32>, vector<8x8xf32>, vector<8x8xf32> -> vector<8x24xf32>
    %c0_102 = arith.constant 0 : index
    %c0_103 = arith.constant 0 : index
    %299 = vector.load %arg6[%c0_102, %c0_103] : memref<1x24xf32, #tpu.memory_space<vmem>>, vector<1x24xf32>
    %300 = vector.broadcast %299 : vector<1x24xf32> to vector<8x24xf32>
    %301 = arith.addf %298, %300 : vector<8x24xf32>
    %c0_104 = arith.constant 0 : index
    %c0_105 = arith.constant 0 : index
    %302 = vector.load %arg7[%c0_104, %c0_105] : memref<24x32xf32, #tpu.memory_space<vmem>>, vector<24x32xf32>
    %cst_106 = arith.constant dense<0.000000e+00> : vector<8x32xf32>
    %303 = tpu.matmul %301, %302, %cst_106 {dimension_numbers = #tpu.dot_dimension_numbers<[1], [0], [0], [1], [0, 0, 1, 1], [], []>} : vector<8x24xf32>, vector<24x32xf32>, vector<8x32xf32> -> vector<8x32xf32>
    %c0_107 = arith.constant 0 : index
    %c0_108 = arith.constant 0 : index
    %304 = vector.load %arg8[%c0_107, %c0_108] : memref<1x32xf32, #tpu.memory_space<vmem>>, vector<1x32xf32>
    %305 = vector.broadcast %304 : vector<1x32xf32> to vector<8x32xf32>
    %306 = arith.addf %303, %305 : vector<8x32xf32>
    %cst_109 = arith.constant 0.000000e+00 : f32
    %307 = vector.broadcast %cst_109 : f32 to vector<8x32xf32>
    %308 = arith.maximumf %306, %307 : vector<8x32xf32>
    %c0_110 = arith.constant 0 : index
    %c0_111 = arith.constant 0 : index
    %309 = vector.load %arg9[%c0_110, %c0_111] : memref<32x5xf32, #tpu.memory_space<vmem>>, vector<32x5xf32>
    %cst_112 = arith.constant dense<0.000000e+00> : vector<8x5xf32>
    %310 = tpu.matmul %308, %309, %cst_112 {dimension_numbers = #tpu.dot_dimension_numbers<[1], [0], [0], [1], [0, 0, 1, 1], [], []>} : vector<8x32xf32>, vector<32x5xf32>, vector<8x5xf32> -> vector<8x5xf32>
    %c0_113 = arith.constant 0 : index
    %c0_114 = arith.constant 0 : index
    %311 = vector.load %arg10[%c0_113, %c0_114] : memref<1x5xf32, #tpu.memory_space<vmem>>, vector<1x5xf32>
    %312 = vector.broadcast %311 : vector<1x5xf32> to vector<8x5xf32>
    %313 = arith.addf %310, %312 : vector<8x5xf32>
    %314 = vector.extract_strided_slice %313 {offsets = [0, 0], sizes = [2, 5], strides = [1, 1]} : vector<8x5xf32> to vector<2x5xf32>
    %c0_115 = arith.constant 0 : index
    %c0_116 = arith.constant 0 : index
    %315 = vector.load %arg11[%c0_115, %c0_116] : memref<2x5xf32, #tpu.memory_space<vmem>>, vector<2x5xf32>
    tpu.vector_store %arg11[%c0_115, %c0_116], %314 {strides = array<i32>} : memref<2x5xf32, #tpu.memory_space<vmem>>, vector<2x5xf32>,
    return
  }
}

</mosaic_0001>

<llo_original>
// kernel: tpu_custom_call.1
$region0: #{tpu_custom_call.1}
  #allocation0 [shape = 'u32[]', space=smem, size = 0x4, offset = 0x4, fixed_abs, tag = 'smem constant byte address 0x4 - core index']
  #allocation1 [shape = 'u32[144,128]{1,0:T(1,128)}', space=vmem, size = 0x12000, scoped, tag = 'internal scratch']
  #allocation2 [shape = 'f32[64,128]{1,0:T(8,128)}', space=vmem, size = 0x8000, scoped, tag = 'scratch operand']
  #allocation3 [shape = 'f32[64,32]{1,0:T(8,128)}', space=vmem, size = 0x8000, scoped, tag = 'scratch operand']
  %s0 = inlined_call_operand.vmem [shape: s32[64,1], index: 0, kind: input, shape index: {}]
  %s1 = inlined_call_operand.vmem [shape: f32[50,16], index: 1, kind: input, shape index: {}]
  %s2 = inlined_call_operand.vmem [shape: f32[16,128], index: 2, kind: input, shape index: {}]
  %s3 = inlined_call_operand.vmem [shape: f32[32,128], index: 3, kind: input, shape index: {}]
  %s4 = inlined_call_operand.vmem [shape: f32[1,128], index: 4, kind: input, shape index: {}]
  %s5 = inlined_call_operand.vmem [shape: f32[32,72], index: 5, kind: input, shape index: {}]
  %s6 = inlined_call_operand.vmem [shape: f32[1,24], index: 6, kind: input, shape index: {}]
  %s7 = inlined_call_operand.vmem [shape: f32[24,32], index: 7, kind: input, shape index: {}]
  %s8 = inlined_call_operand.vmem [shape: f32[1,32], index: 8, kind: input, shape index: {}]
  %s9 = inlined_call_operand.vmem [shape: f32[32,5], index: 9, kind: input, shape index: {}]
  %s10 = inlined_call_operand.vmem [shape: f32[1,5], index: 10, kind: input, shape index: {}]
  %s11 = inlined_call_operand.hbm [shape: f32[2,5], index: 11, kind: output, shape index: {}]
  %s12 = sld [smem:[#allocation0]]
  $region54: #{tpu_custom_call.1} parent=0
    _
  %s14 = ssub.s32 1, %s12
  %s15 = scalar_select 0, %s14, %s12
  $region1: #{tpu_custom_call.1} parent=0
    #allocation4 [shape = 'u8[1024]{0}', space=vmem, size = 0x400, scoped, tag = 'output window, operand 0, single buffered']
    #allocation5 [shape = 's32[1]{0}', space=sflag, size = 0x4, scoped, tag = 'scoped memory for tpu_custom_call.1']
    %16 = vsyncpa [#allocation5], 0
    // Predicated region
    $region2: #{tpu_custom_call.1} parent=1 // pred_check
      _
    $region3: #{tpu_custom_call.1} parent=1 // pred_check_branch
      %18 = sbr.rel (0) target = $region5
    $region4: #{tpu_custom_call.1} parent=1 // pred_region
      _
    $region5: #{tpu_custom_call.1} parent=1 // pred_fallthru
      _
    // Predicated region
    $region6: #{tpu_custom_call.1} parent=1 // pred_check
      _
    $region7: #{tpu_custom_call.1} parent=1 // pred_check_branch
      %20 = sbr.rel (0) target = $region9
    $region8: #{tpu_custom_call.1} parent=1 // pred_region
      _
    $region9: #{tpu_custom_call.1} parent=1 // pred_fallthru
      _
    // Predicated region
    $region10: #{tpu_custom_call.1} parent=1 // pred_check
      _
    $region11: #{tpu_custom_call.1} parent=1 // pred_check_branch
      %22 = sbr.rel (0) target = $region13
    $region12: #{tpu_custom_call.1} parent=1 // pred_region
      _
    $region13: #{tpu_custom_call.1} parent=1 // pred_fallthru
      _
    // Predicated region
    $region14: #{tpu_custom_call.1} parent=1 // pred_check
      _
    $region15: #{tpu_custom_call.1} parent=1 // pred_check_branch
      %24 = sbr.rel (0) target = $region17
    $region16: #{tpu_custom_call.1} parent=1 // pred_region
      _
    $region17: #{tpu_custom_call.1} parent=1 // pred_fallthru
      _
    // Predicated region
    $region18: #{tpu_custom_call.1} parent=1 // pred_check
      _
    $region19: #{tpu_custom_call.1} parent=1 // pred_check_branch
      %26 = sbr.rel (0) target = $region21
    $region20: #{tpu_custom_call.1} parent=1 // pred_region
      _
    $region21: #{tpu_custom_call.1} parent=1 // pred_fallthru
      _
    // Predicated region
    $region22: #{tpu_custom_call.1} parent=1 // pred_check
      _
    $region23: #{tpu_custom_call.1} parent=1 // pred_check_branch
      %28 = sbr.rel (0) target = $region25
    $region24: #{tpu_custom_call.1} parent=1 // pred_region
      _
    $region25: #{tpu_custom_call.1} parent=1 // pred_fallthru
      _
    // Predicated region
    $region26: #{tpu_custom_call.1} parent=1 // pred_check
      _
    $region27: #{tpu_custom_call.1} parent=1 // pred_check_branch
      %30 = sbr.rel (0) target = $region29
    $region28: #{tpu_custom_call.1} parent=1 // pred_region
      _
    $region29: #{tpu_custom_call.1} parent=1 // pred_fallthru
      _
    // Predicated region
    $region30: #{tpu_custom_call.1} parent=1 // pred_check
      _
    $region31: #{tpu_custom_call.1} parent=1 // pred_check_branch
      %32 = sbr.rel (0) target = $region33
    $region32: #{tpu_custom_call.1} parent=1 // pred_region
      _
    $region33: #{tpu_custom_call.1} parent=1 // pred_fallthru
      _
    // Predicated region
    $region34: #{tpu_custom_call.1} parent=1 // pred_check
      _
    $region35: #{tpu_custom_call.1} parent=1 // pred_check_branch
      %34 = sbr.rel (0) target = $region37
    $region36: #{tpu_custom_call.1} parent=1 // pred_region
      _
    $region37: #{tpu_custom_call.1} parent=1 // pred_fallthru
      _
    // Predicated region
    $region38: #{tpu_custom_call.1} parent=1 // pred_check
      _
    $region39: #{tpu_custom_call.1} parent=1 // pred_check_branch
      %36 = sbr.rel (0) target = $region41
    $region40: #{tpu_custom_call.1} parent=1 // pred_region
      _
    $region41: #{tpu_custom_call.1} parent=1 // pred_fallthru
      _
    // Predicated region
    $region42: #{tpu_custom_call.1} parent=1 // pred_check
      _
    $region43: #{tpu_custom_call.1} parent=1 // pred_check_branch
      %38 = sbr.rel (0) target = $region45
    $region44: #{tpu_custom_call.1} parent=1 // pred_region
      _
    $region45: #{tpu_custom_call.1} parent=1 // pred_fallthru
      _
    %v40 = vlaneseq
    %v41 = vand.u32 %v40, 127
    %vm42 = vcmp.ge.s32.totalorder %v41, 64
    %vm43 = vcmp.lt.s32.totalorder %v41, 96
    %vm44 = vmand %vm42, %vm43
    %v45 = vsel %vm44, 1.0, 0.5
    %v46 = vld [vmem:[%s0] sm:$0xff]
    %v47 = vld [vmem:[%s0 + $0x8] sm:$0xff]
    %v48 = vld [vmem:[%s0 + $0x10] sm:$0xff]
    %v49 = vld [vmem:[%s0 + $0x18] sm:$0xff]
    %v50 = vld [vmem:[%s0 + $0x20] sm:$0xff]
    %v51 = vld [vmem:[%s0 + $0x28] sm:$0xff]
    %v52 = vld [vmem:[%s0 + $0x30] sm:$0xff]
    %v53 = vld [vmem:[%s0 + $0x38] sm:$0xff]
    %54 = vset.pattern.permute.xlu0 0
    %55 = vperm.xlu0 %54, %v46
    %v56 = vpop.permute.xlu0 %55
    %57 = vset.pattern.permute.xlu0 0
    %58 = vperm.xlu0 %57, %v47
    %v59 = vpop.permute.xlu0 %58
    %60 = vset.pattern.permute.xlu0 0
    %61 = vperm.xlu0 %60, %v48
    %v62 = vpop.permute.xlu0 %61
    %63 = vset.pattern.permute.xlu0 0
    %64 = vperm.xlu0 %63, %v49
    %v65 = vpop.permute.xlu0 %64
    %66 = vset.pattern.permute.xlu0 0
    %67 = vperm.xlu0 %66, %v50
    %v68 = vpop.permute.xlu0 %67
    %69 = vset.pattern.permute.xlu0 0
    %70 = vperm.xlu0 %69, %v51
    %v71 = vpop.permute.xlu0 %70
    %72 = vset.pattern.permute.xlu0 0
    %73 = vperm.xlu0 %72, %v52
    %v74 = vpop.permute.xlu0 %73
    %75 = vset.pattern.permute.xlu0 0
    %76 = vperm.xlu0 %75, %v53
    %v77 = vpop.permute.xlu0 %76
    %vm78 = vcmp.eq.s32.totalorder %v41, %v56
    %vm79 = vcmp.eq.s32.totalorder %v41, %v59
    %vm80 = vcmp.eq.s32.totalorder %v41, %v62
    %vm81 = vcmp.eq.s32.totalorder %v41, %v65
    %vm82 = vcmp.eq.s32.totalorder %v41, %v68
    %vm83 = vcmp.eq.s32.totalorder %v41, %v71
    %vm84 = vcmp.eq.s32.totalorder %v41, %v74
    %vm85 = vcmp.eq.s32.totalorder %v41, %v77
    %v86 = vsel %vm78, 1, 0
    %v87 = vsel %vm79, 1, 0
    %v88 = vsel %vm80, 1, 0
    %v89 = vsel %vm81, 1, 0
    %v90 = vsel %vm82, 1, 0
    %v91 = vsel %vm83, 1, 0
    %v92 = vsel %vm84, 1, 0
    %v93 = vsel %vm85, 1, 0
    %v94 = vcvt.s32.f32 %v86
    %v95 = vcvt.s32.f32 %v87
    %v96 = vcvt.s32.f32 %v88
    %v97 = vcvt.s32.f32 %v89
    %v98 = vcvt.s32.f32 %v90
    %v99 = vcvt.s32.f32 %v91
    %v100 = vcvt.s32.f32 %v92
    %v101 = vcvt.s32.f32 %v93
    %v102 = vld [vmem:[%s1] sm:$0xff]
    %v103 = vld [vmem:[%s1 + $0x8] sm:$0xff]
    %v104 = vld [vmem:[%s1 + $0x10] sm:$0xff]
    %v105 = vld [vmem:[%s1 + $0x18] sm:$0xff]
    %v106 = vld [vmem:[%s1 + $0x20] sm:$0xff]
    %v107 = vld [vmem:[%s1 + $0x28] sm:$0xff]
    %v108 = vld [vmem:[%s1 + $0x30] sm:$0x3]
    %vm109 = vcmask 408576
    %v111 = vsel %vm109, %v94, 0
    %v114 = vsel %vm109, %v95, 0
    %v117 = vsel %vm109, %v96, 0
    %v120 = vsel %vm109, %v97, 0
    %v123 = vsel %vm109, %v98, 0
    %v126 = vsel %vm109, %v99, 0
    %v129 = vsel %vm109, %v100, 0
    %v132 = vsel %vm109, %v101, 0
    %vm134 = vcmask 1041408
    %v136 = vsel %vm134, %v108, 0
    %138 = vmatprep.subr.mxu0 0.0
    %139 = vmatpush1.msra.mxu0 %v102
    %140 = vmatprep.subr.mxu0 0.0
    %141 = vmatpush1.msra.mxu0 %v103
    %142 = vmatprep.subr.mxu0 0.0
    %143 = vmatpush1.msra.mxu0 %v104
    %144 = vmatprep.subr.mxu0 0.0
    %145 = vmatpush1.msra.mxu0 %v105
    %146 = vmatprep.subr.mxu0 0.0
    %147 = vmatpush1.msra.mxu0 %v106
    %148 = vmatprep.subr.mxu0 0.0
    %149 = vmatpush1.msra.mxu0 %v107
    %150 = vmatprep.subr.mxu0 0.0
    %151 = vmatpush1.msra.mxu0 %v136
    %152 = vmatprep.subr.mxu0 0.0
    %153 = vmatpush1.msra.mxu0 0.0
    %154 = vmatprep.subr.mxu0 0.0
    %155 = vmatpush1.msra.mxu0 0.0
    %156 = vmatprep.subr.mxu0 0.0
    %157 = vmatpush1.msra.mxu0 0.0
    %158 = vmatprep.subr.mxu0 0.0
    %159 = vmatpush1.msra.mxu0 0.0
    %160 = vmatprep.subr.mxu0 0.0
    %161 = vmatpush1.msra.mxu0 0.0
    %162 = vmatprep.subr.mxu0 0.0
    %163 = vmatpush1.msra.mxu0 0.0
    %164 = vmatprep.subr.mxu0 0.0
    %165 = vmatpush1.msra.mxu0 0.0
    %166 = vmatprep.subr.mxu0 0.0
    %167 = vmatpush1.msra.mxu0 0.0
    %168 = vmatprep.subr.mxu0 0.0
    %169 = vmatpush1.msra.mxu0 0.0
    %170 = vmatprep.subr.mxu0 0.0
    %171 = vmatpush1.msra.mxu0 0.0
    %172 = vmatprep.subr.mxu0 0.0
    %173 = vmatpush1.msra.mxu0 0.0
    %174 = vmatprep.subr.mxu0 0.0
    %175 = vmatpush1.msra.mxu0 0.0
    %176 = vmatprep.subr.mxu0 0.0
    %177 = vmatpush1.msra.mxu0 0.0
    %178 = vmatprep.subr.mxu0 0.0
    %179 = vmatpush1.msra.mxu0 0.0
    %180 = vmatprep.subr.mxu0 0.0
    %181 = vmatpush1.msra.mxu0 0.0
    %182 = vmatprep.subr.mxu0 0.0
    %183 = vmatpush1.msra.mxu0 0.0
    %184 = vmatprep.subr.mxu0 0.0
    %185 = vmatpush1.msra.mxu0 0.0
    %186 = vmatprep.subr.mxu0 0.0
    %187 = vmatpush1.msra.mxu0 0.0
    %188 = vmatprep.subr.mxu0 0.0
    %189 = vmatpush1.msra.mxu0 0.0
    %190 = vmatprep.subr.mxu0 0.0
    %191 = vmatpush1.msra.mxu0 0.0
    %192 = vmatprep.subr.mxu0 0.0
    %193 = vmatpush1.msra.mxu0 0.0
    %194 = vmatprep.subr.mxu0 0.0
    %195 = vmatpush1.msra.mxu0 0.0
    %196 = vmatprep.subr.mxu0 0.0
    %197 = vmatpush1.msra.mxu0 0.0
    %198 = vmatprep.subr.mxu0 0.0
    %199 = vmatpush1.msra.mxu0 0.0
    %200 = vmatprep.subr.mxu0 0.0
    %201 = vmatpush1.msra.mxu0 0.0
    %202 = vmatprep.mubr.f32.mxu0 0.0
    %203 = vmatmul.mubr.f32.gmra.mrb[0].mxu0 %v111
    %v204 = vpop.f32.mrb[0].mxu0
    %v205 = vadd.f32 0.0, %v204
    %v206 = vpop.f32.mrb[0].mxu0
    %207 = vmatprep.mubr.f32.mxu0 0.0
    %208 = vmatmul.mubr.f32.gmra.mrb[0].mxu0 %v114
    %v209 = vpop.f32.mrb[0].mxu0
    %v210 = vadd.f32 0.0, %v209
    %v211 = vpop.f32.mrb[0].mxu0
    %212 = vmatprep.mubr.f32.mxu0 0.0
    %213 = vmatmul.mubr.f32.gmra.mrb[0].mxu0 %v117
    %v214 = vpop.f32.mrb[0].mxu0
    %v215 = vadd.f32 0.0, %v214
    %v216 = vpop.f32.mrb[0].mxu0
    %217 = vmatprep.mubr.f32.mxu0 0.0
    %218 = vmatmul.mubr.f32.gmra.mrb[0].mxu0 %v120
    %v219 = vpop.f32.mrb[0].mxu0
    %v220 = vadd.f32 0.0, %v219
    %v221 = vpop.f32.mrb[0].mxu0
    %222 = vmatprep.mubr.f32.mxu0 0.0
    %223 = vmatmul.mubr.f32.gmra.mrb[0].mxu0 %v123
    %v224 = vpop.f32.mrb[0].mxu0
    %v225 = vadd.f32 0.0, %v224
    %v226 = vpop.f32.mrb[0].mxu0
    %227 = vmatprep.mubr.f32.mxu0 0.0
    %228 = vmatmul.mubr.f32.gmra.mrb[0].mxu0 %v126
    %v229 = vpop.f32.mrb[0].mxu0
    %v230 = vadd.f32 0.0, %v229
    %v231 = vpop.f32.mrb[0].mxu0
    %232 = vmatprep.mubr.f32.mxu0 0.0
    %233 = vmatmul.mubr.f32.gmra.mrb[0].mxu0 %v129
    %v234 = vpop.f32.mrb[0].mxu0
    %v235 = vadd.f32 0.0, %v234
    %v236 = vpop.f32.mrb[0].mxu0
    %237 = vmatprep.mubr.f32.mxu0 0.0
    %238 = vmatmul.mubr.f32.gmra.mrb[0].mxu0 %v132
    %v239 = vpop.f32.mrb[0].mxu0
    %v240 = vadd.f32 0.0, %v239
    %v241 = vpop.f32.mrb[0].mxu0
    %242 = vdwg.mxu0
    %v243 = vld [vmem:[%s2] sm:$0xff]
    %v244 = vld [vmem:[%s2 + $0x8] sm:$0xff]
    %v245 = vld [vmem:[%s4] sm:$0x1]
    %v247 = vlaneseq
    %v248 = vshrl.u32 %v247, 7
    %v249 = vsub.s32 0, %v248
    %v250 = vrot.slane %v245, %v249
    %vm252 = vcmask 130048
    %v254 = vsel %vm252, %v205, 0
    %v257 = vsel %vm252, %v210, 0
    %v260 = vsel %vm252, %v215, 0
    %v263 = vsel %vm252, %v220, 0
    %v266 = vsel %vm252, %v225, 0
    %v269 = vsel %vm252, %v230, 0
    %v272 = vsel %vm252, %v235, 0
    %v275 = vsel %vm252, %v240, 0
    %277 = vmatprep.subr.mxu0 0.0
    %278 = vmatpush1.msra.mxu0 %v243
    %279 = vmatprep.subr.mxu0 0.0
    %280 = vmatpush1.msra.mxu0 %v244
    %281 = vmatprep.subr.mxu0 0.0
    %282 = vmatpush1.msra.mxu0 0.0
    %283 = vmatprep.subr.mxu0 0.0
    %284 = vmatpush1.msra.mxu0 0.0
    %285 = vmatprep.subr.mxu0 0.0
    %286 = vmatpush1.msra.mxu0 0.0
    %287 = vmatprep.subr.mxu0 0.0
    %288 = vmatpush1.msra.mxu0 0.0
    %289 = vmatprep.subr.mxu0 0.0
    %290 = vmatpush1.msra.mxu0 0.0
    %291 = vmatprep.subr.mxu0 0.0
    %292 = vmatpush1.msra.mxu0 0.0
    %293 = vmatprep.subr.mxu0 0.0
    %294 = vmatpush1.msra.mxu0 0.0
    %295 = vmatprep.subr.mxu0 0.0
    %296 = vmatpush1.msra.mxu0 0.0
    %297 = vmatprep.subr.mxu0 0.0
    %298 = vmatpush1.msra.mxu0 0.0
    %299 = vmatprep.subr.mxu0 0.0
    %300 = vmatpush1.msra.mxu0 0.0
    %301 = vmatprep.subr.mxu0 0.0
    %302 = vmatpush1.msra.mxu0 0.0
    %303 = vmatprep.subr.mxu0 0.0
    %304 = vmatpush1.msra.mxu0 0.0
    %305 = vmatprep.subr.mxu0 0.0
    %306 = vmatpush1.msra.mxu0 0.0
    %307 = vmatprep.subr.mxu0 0.0
    %308 = vmatpush1.msra.mxu0 0.0
    %309 = vmatprep.subr.mxu0 0.0
    %310 = vmatpush1.msra.mxu0 0.0
    %311 = vmatprep.subr.mxu0 0.0
    %312 = vmatpush1.msra.mxu0 0.0
    %313 = vmatprep.subr.mxu0 0.0
    %314 = vmatpush1.msra.mxu0 0.0
    %315 = vmatprep.subr.mxu0 0.0
    %316 = vmatpush1.msra.mxu0 0.0
    %317 = vmatprep.subr.mxu0 0.0
    %318 = vmatpush1.msra.mxu0 0.0
    %319 = vmatprep.subr.mxu0 0.0
    %320 = vmatpush1.msra.mxu0 0.0
    %321 = vmatprep.subr.mxu0 0.0
    %322 = vmatpush1.msra.mxu0 0.0
    %323 = vmatprep.subr.mxu0 0.0
    %324 = vmatpush1.msra.mxu0 0.0
    %325 = vmatprep.subr.mxu0 0.0
    %326 = vmatpush1.msra.mxu0 0.0
    %327 = vmatprep.subr.mxu0 0.0
    %328 = vmatpush1.msra.mxu0 0.0
    %329 = vmatprep.subr.mxu0 0.0
    %330 = vmatpush1.msra.mxu0 0.0
    %331 = vmatprep.subr.mxu0 0.0
    %332 = vmatpush1.msra.mxu0 0.0
    %333 = vmatprep.subr.mxu0 0.0
    %334 = vmatpush1.msra.mxu0 0.0
    %335 = vmatprep.subr.mxu0 0.0
    %336 = vmatpush1.msra.mxu0 0.0
    %337 = vmatprep.subr.mxu0 0.0
    %338 = vmatpush1.msra.mxu0 0.0
    %339 = vmatprep.subr.mxu0 0.0
    %340 = vmatpush1.msra.mxu0 0.0
    %341 = vmatprep.mubr.f32.mxu0 0.0
    %342 = vmatmul.mubr.f32.gmra.mrb[0].mxu0 %v254
    %v343 = vpop.f32.mrb[0].mxu0
    %v344 = vadd.f32 %v250, %v343
    %v345 = vpop.f32.mrb[0].mxu0
    %346 = vmatprep.mubr.f32.mxu0 0.0
    %347 = vmatmul.mubr.f32.gmra.mrb[0].mxu0 %v257
    %v348 = vpop.f32.mrb[0].mxu0
    %v349 = vadd.f32 %v250, %v348
    %v350 = vpop.f32.mrb[0].mxu0
    %351 = vmatprep.mubr.f32.mxu0 0.0
    %352 = vmatmul.mubr.f32.gmra.mrb[0].mxu0 %v260
    %v353 = vpop.f32.mrb[0].mxu0
    %v354 = vadd.f32 %v250, %v353
    %v355 = vpop.f32.mrb[0].mxu0
    %356 = vmatprep.mubr.f32.mxu0 0.0
    %357 = vmatmul.mubr.f32.gmra.mrb[0].mxu0 %v263
    %v358 = vpop.f32.mrb[0].mxu0
    %v359 = vadd.f32 %v250, %v358
    %v360 = vpop.f32.mrb[0].mxu0
    %361 = vmatprep.mubr.f32.mxu0 0.0
    %362 = vmatmul.mubr.f32.gmra.mrb[0].mxu0 %v266
    %v363 = vpop.f32.mrb[0].mxu0
    %v364 = vadd.f32 %v250, %v363
    %v365 = vpop.f32.mrb[0].mxu0
    %366 = vmatprep.mubr.f32.mxu0 0.0
    %367 = vmatmul.mubr.f32.gmra.mrb[0].mxu0 %v269
    %v368 = vpop.f32.mrb[0].mxu0
    %v369 = vadd.f32 %v250, %v368
    %v370 = vpop.f32.mrb[0].mxu0
    %371 = vmatprep.mubr.f32.mxu0 0.0
    %372 = vmatmul.mubr.f32.gmra.mrb[0].mxu0 %v272
    %v373 = vpop.f32.mrb[0].mxu0
    %v374 = vadd.f32 %v250, %v373
    %v375 = vpop.f32.mrb[0].mxu0
    %376 = vmatprep.mubr.f32.mxu0 0.0
    %377 = vmatmul.mubr.f32.gmra.mrb[0].mxu0 %v275
    %v378 = vpop.f32.mrb[0].mxu0
    %v379 = vadd.f32 %v250, %v378
    %v380 = vpop.f32.mrb[0].mxu0
    %381 = vdwg.mxu0
    %v382 = vmul.f32 %v344, %v45
    %v383 = vmul.f32 %v349, %v45
    %v384 = vmul.f32 %v354, %v45
    %v385 = vmul.f32 %v359, %v45
    %v386 = vmul.f32 %v364, %v45
    %v387 = vmul.f32 %v369, %v45
    %v388 = vmul.f32 %v374, %v45
    %v389 = vmul.f32 %v379, %v45
    %390 = vst [vmem:[#allocation2] sm:$0xff] %v382
    %391 = vst [vmem:[#allocation2 + $0x8] sm:$0xff] %v383
    %392 = vst [vmem:[#allocation2 + $0x10] sm:$0xff] %v384
    %393 = vst [vmem:[#allocation2 + $0x18] sm:$0xff] %v385
    %394 = vst [vmem:[#allocation2 + $0x20] sm:$0xff] %v386
    %395 = vst [vmem:[#allocation2 + $0x28] sm:$0xff] %v387
    %396 = vst [vmem:[#allocation2 + $0x30] sm:$0xff] %v388
    %397 = vst [vmem:[#allocation2 + $0x38] sm:$0xff] %v389
    %v398 = vld [vmem:[%s3] sm:$0xff]
    %v399 = vld [vmem:[%s3 + $0x8] sm:$0xff]
    %v400 = vld [vmem:[%s3 + $0x10] sm:$0xff]
    %v401 = vld [vmem:[%s3 + $0x18] sm:$0xff]
    %v402 = vmul.f32 %v398, %v45
    %v403 = vmul.f32 %v399, %v45
    %v404 = vmul.f32 %v400, %v45
    %v405 = vmul.f32 %v401, %v45
    %v406 = vpack.c.bf16 %v403, %v402
    %v407 = vpack.c.bf16 %v405, %v404
    %v408 = vld [vmem:[#allocation2] sm:$0xff]
    %vm409 = vcmask 261120
    %v411 = vsel %vm409, 0, 0
    %413 = vmatprep.subr.bf16.mxu0 0
    %414 = vmatpush1.bf16.msra.mxu0 %v406
    %415 = vmatprep.subr.bf16.mxu0 0
    %416 = vmatpush1.bf16.msra.mxu0 %v407
    %417 = vmatprep.subr.bf16.mxu0 0
    %418 = vmatpush1.bf16.msra.mxu0 0
    %419 = vmatprep.subr.bf16.mxu0 0
    %420 = vmatpush1.bf16.msra.mxu0 0
    %421 = vmatprep.subr.bf16.mxu0 0
    %422 = vmatpush1.bf16.msra.mxu0 0
    %423 = vmatprep.subr.bf16.mxu0 0
    %424 = vmatpush1.bf16.msra.mxu0 0
    %425 = vmatprep.subr.bf16.mxu0 0
    %426 = vmatpush1.bf16.msra.mxu0 0
    %427 = vmatprep.subr.bf16.mxu0 0
    %428 = vmatpush1.bf16.msra.mxu0 0
    %429 = vmatprep.subr.bf16.mxu0 0
    %430 = vmatpush1.bf16.msra.mxu0 0
    %431 = vmatprep.subr.bf16.mxu0 0
    %432 = vmatpush1.bf16.msra.mxu0 0
    %433 = vmatprep.subr.bf16.mxu0 0
    %434 = vmatpush1.bf16.msra.mxu0 0
    %435 = vmatprep.subr.bf16.mxu0 0
    %436 = vmatpush1.bf16.msra.mxu0 0
    %437 = vmatprep.subr.bf16.mxu0 0
    %438 = vmatpush1.bf16.msra.mxu0 0
    %439 = vmatprep.subr.bf16.mxu0 0
    %440 = vmatpush1.bf16.msra.mxu0 0
    %441 = vmatprep.subr.bf16.mxu0 0
    %442 = vmatpush1.bf16.msra.mxu0 0
    %443 = vmatprep.subr.bf16.mxu0 0
    %444 = vmatpush1.bf16.msra.mxu0 0
    %445 = vmatprep.mubr.bf16.mxu0 0
    %446 = vmatmul.mubr.bf16.gmra.mrb[0].mxu0 %v411
    %v447 = vpop.f32.mrb[0].mxu0
    %v448 = vadd.f32 0.0, %v447
    %v449 = vpop.f32.mrb[0].mxu0
    %v450 = vpop.f32.mrb[0].mxu0
    %v451 = vpop.f32.mrb[0].mxu0
    %452 = vdwg.mxu0
    %v453 = vadd.f32 %v408, %v448
    %v454 = vtanh.pop %v453
    %v455 = vmul.f32 %v454, 0.5
    %v456 = vadd.f32 %v455, 0.5
    %v457 = vmul.f32 %v456, 0.0
    %459 = vrot.lane.b32.xlu0 %v454, 64
    %v460 = vpop.permute.xlu0 %459
    %v462 = vmul.f32 %v456, %v460
    %464 = vrot.lane.b32.xlu0 %v462, 32
    %v465 = vpop.permute.xlu0 %464
    %v467 = vadd.f32 %v457, %v465
    %v468 = vtanh.pop %v467
    %470 = vrot.lane.b32.xlu0 %v468, 64
    %v471 = vpop.permute.xlu0 %470
    %v473 = vmul.f32 %v456, %v471
    %475 = vrot.lane.b32.xlu0 %v473, 32
    %v476 = vpop.permute.xlu0 %475
    %478 = vst.msk [vmem:[#allocation3] sm:$0xff] %vm409, %v476
    %v479 = vld [vmem:[#allocation2 + $0x8] sm:$0xff]
    %v480 = vpack.c.bf16 %v473, %v473
    %482 = vrot.lane.b32.xlu0 %v480, 32
    %v483 = vpop.permute.xlu0 %482
    %v485 = vsel %vm409, %v483, 0
    %487 = vmatprep.subr.bf16.mxu0 0
    %488 = vmatpush1.bf16.msra.mxu0 %v406
    %489 = vmatprep.subr.bf16.mxu0 0
    %490 = vmatpush1.bf16.msra.mxu0 %v407
    %491 = vmatprep.subr.bf16.mxu0 0
    %492 = vmatpush1.bf16.msra.mxu0 0
    %493 = vmatprep.subr.bf16.mxu0 0
    %494 = vmatpush1.bf16.msra.mxu0 0
    %495 = vmatprep.subr.bf16.mxu0 0
    %496 = vmatpush1.bf16.msra.mxu0 0
    %497 = vmatprep.subr.bf16.mxu0 0
    %498 = vmatpush1.bf16.msra.mxu0 0
    %499 = vmatprep.subr.bf16.mxu0 0
    %500 = vmatpush1.bf16.msra.mxu0 0
    %501 = vmatprep.subr.bf16.mxu0 0
    %502 = vmatpush1.bf16.msra.mxu0 0
    %503 = vmatprep.subr.bf16.mxu0 0
    %504 = vmatpush1.bf16.msra.mxu0 0
    %505 = vmatprep.subr.bf16.mxu0 0
    %506 = vmatpush1.bf16.msra.mxu0 0
    %507 = vmatprep.subr.bf16.mxu0 0
    %508 = vmatpush1.bf16.msra.mxu0 0
    %509 = vmatprep.subr.bf16.mxu0 0
    %510 = vmatpush1.bf16.msra.mxu0 0
    %511 = vmatprep.subr.bf16.mxu0 0
    %512 = vmatpush1.bf16.msra.mxu0 0
    %513 = vmatprep.subr.bf16.mxu0 0
    %514 = vmatpush1.bf16.msra.mxu0 0
    %515 = vmatprep.subr.bf16.mxu0 0
    %516 = vmatpush1.bf16.msra.mxu0 0
    %517 = vmatprep.subr.bf16.mxu0 0
    %518 = vmatpush1.bf16.msra.mxu0 0
    %519 = vmatprep.mubr.bf16.mxu0 0
    %520 = vmatmul.mubr.bf16.gmra.mrb[0].mxu0 %v485
    %v521 = vpop.f32.mrb[0].mxu0
    %v522 = vadd.f32 0.0, %v521
    %v523 = vpop.f32.mrb[0].mxu0
    %v524 = vpop.f32.mrb[0].mxu0
    %v525 = vpop.f32.mrb[0].mxu0
    %526 = vdwg.mxu0
    %v527 = vadd.f32 %v479, %v522
    %v528 = vtanh.pop %v527
    %v529 = vmul.f32 %v528, 0.5
    %v530 = vadd.f32 %v529, 0.5
    %v531 = vmul.f32 %v530, %v467
    %533 = vrot.lane.b32.xlu0 %v528, 64
    %v534 = vpop.permute.xlu0 %533
    %v536 = vmul.f32 %v530, %v534
    %538 = vrot.lane.b32.xlu0 %v536, 32
    %v539 = vpop.permute.xlu0 %538
    %v541 = vadd.f32 %v531, %v539
    %v542 = vtanh.pop %v541
    %544 = vrot.lane.b32.xlu0 %v542, 64
    %v545 = vpop.permute.xlu0 %544
    %v547 = vmul.f32 %v530, %v545
    %549 = vrot.lane.b32.xlu0 %v547, 32
    %v550 = vpop.permute.xlu0 %549
    %552 = vst.msk [vmem:[#allocation3 + $0x8] sm:$0xff] %vm409, %v550
    %v553 = vld [vmem:[#allocation2 + $0x10] sm:$0xff]
    %v554 = vpack.c.bf16 %v547, %v547
    %556 = vrot.lane.b32.xlu0 %v554, 32
    %v557 = vpop.permute.xlu0 %556
    %v559 = vsel %vm409, %v557, 0
    %561 = vmatprep.subr.bf16.mxu0 0
    %562 = vmatpush1.bf16.msra.mxu0 %v406
    %563 = vmatprep.subr.bf16.mxu0 0
    %564 = vmatpush1.bf16.msra.mxu0 %v407
    %565 = vmatprep.subr.bf16.mxu0 0
    %566 = vmatpush1.bf16.msra.mxu0 0
    %567 = vmatprep.subr.bf16.mxu0 0
    %568 = vmatpush1.bf16.msra.mxu0 0
    %569 = vmatprep.subr.bf16.mxu0 0
    %570 = vmatpush1.bf16.msra.mxu0 0
    %571 = vmatprep.subr.bf16.mxu0 0
    %572 = vmatpush1.bf16.msra.mxu0 0
    %573 = vmatprep.subr.bf16.mxu0 0
    %574 = vmatpush1.bf16.msra.mxu0 0
    %575 = vmatprep.subr.bf16.mxu0 0
    %576 = vmatpush1.bf16.msra.mxu0 0
    %577 = vmatprep.subr.bf16.mxu0 0
    %578 = vmatpush1.bf16.msra.mxu0 0
    %579 = vmatprep.subr.bf16.mxu0 0
    %580 = vmatpush1.bf16.msra.mxu0 0
    %581 = vmatprep.subr.bf16.mxu0 0
    %582 = vmatpush1.bf16.msra.mxu0 0
    %583 = vmatprep.subr.bf16.mxu0 0
    %584 = vmatpush1.bf16.msra.mxu0 0
    %585 = vmatprep.subr.bf16.mxu0 0
    %586 = vmatpush1.bf16.msra.mxu0 0
    %587 = vmatprep.subr.bf16.mxu0 0
    %588 = vmatpush1.bf16.msra.mxu0 0
    %589 = vmatprep.subr.bf16.mxu0 0
    %590 = vmatpush1.bf16.msra.mxu0 0
    %591 = vmatprep.subr.bf16.mxu0 0
    %592 = vmatpush1.bf16.msra.mxu0 0
    %593 = vmatprep.mubr.bf16.mxu0 0
    %594 = vmatmul.mubr.bf16.gmra.mrb[0].mxu0 %v559
    %v595 = vpop.f32.mrb[0].mxu0
    %v596 = vadd.f32 0.0, %v595
    %v597 = vpop.f32.mrb[0].mxu0
    %v598 = vpop.f32.mrb[0].mxu0
    %v599 = vpop.f32.mrb[0].mxu0
    %600 = vdwg.mxu0
    %v601 = vadd.f32 %v553, %v596
    %v602 = vtanh.pop %v601
    %v603 = vmul.f32 %v602, 0.5
    %v604 = vadd.f32 %v603, 0.5
    %v605 = vmul.f32 %v604, %v541
    %607 = vrot.lane.b32.xlu0 %v602, 64
    %v608 = vpop.permute.xlu0 %607
    %v610 = vmul.f32 %v604, %v608
    %612 = vrot.lane.b32.xlu0 %v610, 32
    %v613 = vpop.permute.xlu0 %612
    %v615 = vadd.f32 %v605, %v613
    %v616 = vtanh.pop %v615
    %618 = vrot.lane.b32.xlu0 %v616, 64
    %v619 = vpop.permute.xlu0 %618
    %v621 = vmul.f32 %v604, %v619
    %623 = vrot.lane.b32.xlu0 %v621, 32
    %v624 = vpop.permute.xlu0 %623
    %626 = vst.msk [vmem:[#allocation3 + $0x10] sm:$0xff] %vm409, %v624
    %v627 = vld [vmem:[#allocation2 + $0x18] sm:$0xff]
    %v628 = vpack.c.bf16 %v621, %v621
    %630 = vrot.lane.b32.xlu0 %v628, 32
    %v631 = vpop.permute.xlu0 %630
    %v633 = vsel %vm409, %v631, 0
    %635 = vmatprep.subr.bf16.mxu0 0
    %636 = vmatpush1.bf16.msra.mxu0 %v406
    %637 = vmatprep.subr.bf16.mxu0 0
    %638 = vmatpush1.bf16.msra.mxu0 %v407
    %639 = vmatprep.subr.bf16.mxu0 0
    %640 = vmatpush1.bf16.msra.mxu0 0
    %641 = vmatprep.subr.bf16.mxu0 0
    %642 = vmatpush1.bf16.msra.mxu0 0
    %643 = vmatprep.subr.bf16.mxu0 0
    %644 = vmatpush1.bf16.msra.mxu0 0
    %645 = vmatprep.subr.bf16.mxu0 0
    %646 = vmatpush1.bf16.msra.mxu0 0
    %647 = vmatprep.subr.bf16.mxu0 0
    %648 = vmatpush1.bf16.msra.mxu0 0
    %649 = vmatprep.subr.bf16.mxu0 0
    %650 = vmatpush1.bf16.msra.mxu0 0
    %651 = vmatprep.subr.bf16.mxu0 0
    %652 = vmatpush1.bf16.msra.mxu0 0
    %653 = vmatprep.subr.bf16.mxu0 0
    %654 = vmatpush1.bf16.msra.mxu0 0
    %655 = vmatprep.subr.bf16.mxu0 0
    %656 = vmatpush1.bf16.msra.mxu0 0
    %657 = vmatprep.subr.bf16.mxu0 0
    %658 = vmatpush1.bf16.msra.mxu0 0
    %659 = vmatprep.subr.bf16.mxu0 0
    %660 = vmatpush1.bf16.msra.mxu0 0
    %661 = vmatprep.subr.bf16.mxu0 0
    %662 = vmatpush1.bf16.msra.mxu0 0
    %663 = vmatprep.subr.bf16.mxu0 0
    %664 = vmatpush1.bf16.msra.mxu0 0
    %665 = vmatprep.subr.bf16.mxu0 0
    %666 = vmatpush1.bf16.msra.mxu0 0
    %667 = vmatprep.mubr.bf16.mxu0 0
    %668 = vmatmul.mubr.bf16.gmra.mrb[0].mxu0 %v633
    %v669 = vpop.f32.mrb[0].mxu0
    %v670 = vadd.f32 0.0, %v669
    %v671 = vpop.f32.mrb[0].mxu0
    %v672 = vpop.f32.mrb[0].mxu0
    %v673 = vpop.f32.mrb[0].mxu0
    %674 = vdwg.mxu0
    %v675 = vadd.f32 %v627, %v670
    %v676 = vtanh.pop %v675
    %v677 = vmul.f32 %v676, 0.5
    %v678 = vadd.f32 %v677, 0.5
    %v679 = vmul.f32 %v678, %v615
    %681 = vrot.lane.b32.xlu0 %v676, 64
    %v682 = vpop.permute.xlu0 %681
    %v684 = vmul.f32 %v678, %v682
    %686 = vrot.lane.b32.xlu0 %v684, 32
    %v687 = vpop.permute.xlu0 %686
    %v689 = vadd.f32 %v679, %v687
    %v690 = vtanh.pop %v689
    %692 = vrot.lane.b32.xlu0 %v690, 64
    %v693 = vpop.permute.xlu0 %692
    %v695 = vmul.f32 %v678, %v693
    %697 = vrot.lane.b32.xlu0 %v695, 32
    %v698 = vpop.permute.xlu0 %697
    %700 = vst.msk [vmem:[#allocation3 + $0x18] sm:$0xff] %vm409, %v698
    %v701 = vld [vmem:[#allocation2 + $0x20] sm:$0xff]
    %v702 = vpack.c.bf16 %v695, %v695
    %704 = vrot.lane.b32.xlu0 %v702, 32
    %v705 = vpop.permute.xlu0 %704
    %v707 = vsel %vm409, %v705, 0
    %709 = vmatprep.subr.bf16.mxu0 0
    %710 = vmatpush1.bf16.msra.mxu0 %v406
    %711 = vmatprep.subr.bf16.mxu0 0
    %712 = vmatpush1.bf16.msra.mxu0 %v407
    %713 = vmatprep.subr.bf16.mxu0 0
    %714 = vmatpush1.bf16.msra.mxu0 0
    %715 = vmatprep.subr.bf16.mxu0 0
    %716 = vmatpush1.bf16.msra.mxu0 0
    %717 = vmatprep.subr.bf16.mxu0 0
    %718 = vmatpush1.bf16.msra.mxu0 0
    %719 = vmatprep.subr.bf16.mxu0 0
    %720 = vmatpush1.bf16.msra.mxu0 0
    %721 = vmatprep.subr.bf16.mxu0 0
    %722 = vmatpush1.bf16.msra.mxu0 0
    %723 = vmatprep.subr.bf16.mxu0 0
    %724 = vmatpush1.bf16.msra.mxu0 0
    %725 = vmatprep.subr.bf16.mxu0 0
    %726 = vmatpush1.bf16.msra.mxu0 0
    %727 = vmatprep.subr.bf16.mxu0 0
    %728 = vmatpush1.bf16.msra.mxu0 0
    %729 = vmatprep.subr.bf16.mxu0 0
    %730 = vmatpush1.bf16.msra.mxu0 0
    %731 = vmatprep.subr.bf16.mxu0 0
    %732 = vmatpush1.bf16.msra.mxu0 0
    %733 = vmatprep.subr.bf16.mxu0 0
    %734 = vmatpush1.bf16.msra.mxu0 0
    %735 = vmatprep.subr.bf16.mxu0 0
    %736 = vmatpush1.bf16.msra.mxu0 0
    %737 = vmatprep.subr.bf16.mxu0 0
    %738 = vmatpush1.bf16.msra.mxu0 0
    %739 = vmatprep.subr.bf16.mxu0 0
    %740 = vmatpush1.bf16.msra.mxu0 0
    %741 = vmatprep.mubr.bf16.mxu0 0
    %742 = vmatmul.mubr.bf16.gmra.mrb[0].mxu0 %v707
    %v743 = vpop.f32.mrb[0].mxu0
    %v744 = vadd.f32 0.0, %v743
    %v745 = vpop.f32.mrb[0].mxu0
    %v746 = vpop.f32.mrb[0].mxu0
    %v747 = vpop.f32.mrb[0].mxu0
    %748 = vdwg.mxu0
    %v749 = vadd.f32 %v701, %v744
    %v750 = vtanh.pop %v749
    %v751 = vmul.f32 %v750, 0.5
    %v752 = vadd.f32 %v751, 0.5
    %v753 = vmul.f32 %v752, %v689
    %755 = vrot.lane.b32.xlu0 %v750, 64
    %v756 = vpop.permute.xlu0 %755
    %v758 = vmul.f32 %v752, %v756
    %760 = vrot.lane.b32.xlu0 %v758, 32
    %v761 = vpop.permute.xlu0 %760
    %v763 = vadd.f32 %v753, %v761
    %v764 = vtanh.pop %v763
    %766 = vrot.lane.b32.xlu0 %v764, 64
    %v767 = vpop.permute.xlu0 %766
    %v769 = vmul.f32 %v752, %v767
    %771 = vrot.lane.b32.xlu0 %v769, 32
    %v772 = vpop.permute.xlu0 %771
    %774 = vst.msk [vmem:[#allocation3 + $0x20] sm:$0xff] %vm409, %v772
    %v775 = vld [vmem:[#allocation2 + $0x28] sm:$0xff]
    %v776 = vpack.c.bf16 %v769, %v769
    %778 = vrot.lane.b32.xlu0 %v776, 32
    %v779 = vpop.permute.xlu0 %778
    %v781 = vsel %vm409, %v779, 0
    %783 = vmatprep.subr.bf16.mxu0 0
    %784 = vmatpush1.bf16.msra.mxu0 %v406
    %785 = vmatprep.subr.bf16.mxu0 0
    %786 = vmatpush1.bf16.msra.mxu0 %v407
    %787 = vmatprep.subr.bf16.mxu0 0
    %788 = vmatpush1.bf16.msra.mxu0 0
    %789 = vmatprep.subr.bf16.mxu0 0
    %790 = vmatpush1.bf16.msra.mxu0 0
    %791 = vmatprep.subr.bf16.mxu0 0
    %792 = vmatpush1.bf16.msra.mxu0 0
    %793 = vmatprep.subr.bf16.mxu0 0
    %794 = vmatpush1.bf16.msra.mxu0 0
    %795 = vmatprep.subr.bf16.mxu0 0
    %796 = vmatpush1.bf16.msra.mxu0 0
    %797 = vmatprep.subr.bf16.mxu0 0
    %798 = vmatpush1.bf16.msra.mxu0 0
    %799 = vmatprep.subr.bf16.mxu0 0
    %800 = vmatpush1.bf16.msra.mxu0 0
    %801 = vmatprep.subr.bf16.mxu0 0
    %802 = vmatpush1.bf16.msra.mxu0 0
    %803 = vmatprep.subr.bf16.mxu0 0
    %804 = vmatpush1.bf16.msra.mxu0 0
    %805 = vmatprep.subr.bf16.mxu0 0
    %806 = vmatpush1.bf16.msra.mxu0 0
    %807 = vmatprep.subr.bf16.mxu0 0
    %808 = vmatpush1.bf16.msra.mxu0 0
    %809 = vmatprep.subr.bf16.mxu0 0
    %810 = vmatpush1.bf16.msra.mxu0 0
    %811 = vmatprep.subr.bf16.mxu0 0
    %812 = vmatpush1.bf16.msra.mxu0 0
    %813 = vmatprep.subr.bf16.mxu0 0
    %814 = vmatpush1.bf16.msra.mxu0 0
    %815 = vmatprep.mubr.bf16.mxu0 0
    %816 = vmatmul.mubr.bf16.gmra.mrb[0].mxu0 %v781
    %v817 = vpop.f32.mrb[0].mxu0
    %v818 = vadd.f32 0.0, %v817
    %v819 = vpop.f32.mrb[0].mxu0
    %v820 = vpop.f32.mrb[0].mxu0
    %v821 = vpop.f32.mrb[0].mxu0
    %822 = vdwg.mxu0
    %v823 = vadd.f32 %v775, %v818
    %v824 = vtanh.pop %v823
    %v825 = vmul.f32 %v824, 0.5
    %v826 = vadd.f32 %v825, 0.5
    %v827 = vmul.f32 %v826, %v763
    %829 = vrot.lane.b32.xlu0 %v824, 64
    %v830 = vpop.permute.xlu0 %829
    %v832 = vmul.f32 %v826, %v830
    %834 = vrot.lane.b32.xlu0 %v832, 32
    %v835 = vpop.permute.xlu0 %834
    %v837 = vadd.f32 %v827, %v835
    %v838 = vtanh.pop %v837
    %840 = vrot.lane.b32.xlu0 %v838, 64
    %v841 = vpop.permute.xlu0 %840
    %v843 = vmul.f32 %v826, %v841
    %845 = vrot.lane.b32.xlu0 %v843, 32
    %v846 = vpop.permute.xlu0 %845
    %848 = vst.msk [vmem:[#allocation3 + $0x28] sm:$0xff] %vm409, %v846
    %v849 = vld [vmem:[#allocation2 + $0x30] sm:$0xff]
    %v850 = vpack.c.bf16 %v843, %v843
    %852 = vrot.lane.b32.xlu0 %v850, 32
    %v853 = vpop.permute.xlu0 %852
    %v855 = vsel %vm409, %v853, 0
    %857 = vmatprep.subr.bf16.mxu0 0
    %858 = vmatpush1.bf16.msra.mxu0 %v406
    %859 = vmatprep.subr.bf16.mxu0 0
    %860 = vmatpush1.bf16.msra.mxu0 %v407
    %861 = vmatprep.subr.bf16.mxu0 0
    %862 = vmatpush1.bf16.msra.mxu0 0
    %863 = vmatprep.subr.bf16.mxu0 0
    %864 = vmatpush1.bf16.msra.mxu0 0
    %865 = vmatprep.subr.bf16.mxu0 0
    %866 = vmatpush1.bf16.msra.mxu0 0
    %867 = vmatprep.subr.bf16.mxu0 0
    %868 = vmatpush1.bf16.msra.mxu0 0
    %869 = vmatprep.subr.bf16.mxu0 0
    %870 = vmatpush1.bf16.msra.mxu0 0
    %871 = vmatprep.subr.bf16.mxu0 0
    %872 = vmatpush1.bf16.msra.mxu0 0
    %873 = vmatprep.subr.bf16.mxu0 0
    %874 = vmatpush1.bf16.msra.mxu0 0
    %875 = vmatprep.subr.bf16.mxu0 0
    %876 = vmatpush1.bf16.msra.mxu0 0
    %877 = vmatprep.subr.bf16.mxu0 0
    %878 = vmatpush1.bf16.msra.mxu0 0
    %879 = vmatprep.subr.bf16.mxu0 0
    %880 = vmatpush1.bf16.msra.mxu0 0
    %881 = vmatprep.subr.bf16.mxu0 0
    %882 = vmatpush1.bf16.msra.mxu0 0
    %883 = vmatprep.subr.bf16.mxu0 0
    %884 = vmatpush1.bf16.msra.mxu0 0
    %885 = vmatprep.subr.bf16.mxu0 0
    %886 = vmatpush1.bf16.msra.mxu0 0
    %887 = vmatprep.subr.bf16.mxu0 0
    %888 = vmatpush1.bf16.msra.mxu0 0
    %889 = vmatprep.mubr.bf16.mxu0 0
    %890 = vmatmul.mubr.bf16.gmra.mrb[0].mxu0 %v855
    %v891 = vpop.f32.mrb[0].mxu0
    %v892 = vadd.f32 0.0, %v891
    %v893 = vpop.f32.mrb[0].mxu0
    %v894 = vpop.f32.mrb[0].mxu0
    %v895 = vpop.f32.mrb[0].mxu0
    %896 = vdwg.mxu0
    %v897 = vadd.f32 %v849, %v892
    %v898 = vtanh.pop %v897
    %v899 = vmul.f32 %v898, 0.5
    %v900 = vadd.f32 %v899, 0.5
    %v901 = vmul.f32 %v900, %v837
    %903 = vrot.lane.b32.xlu0 %v898, 64
    %v904 = vpop.permute.xlu0 %903
    %v906 = vmul.f32 %v900, %v904
    %908 = vrot.lane.b32.xlu0 %v906, 32
    %v909 = vpop.permute.xlu0 %908
    %v911 = vadd.f32 %v901, %v909
    %v912 = vtanh.pop %v911
    %914 = vrot.lane.b32.xlu0 %v912, 64
    %v915 = vpop.permute.xlu0 %914
    %v917 = vmul.f32 %v900, %v915
    %919 = vrot.lane.b32.xlu0 %v917, 32
    %v920 = vpop.permute.xlu0 %919
    %922 = vst.msk [vmem:[#allocation3 + $0x30] sm:$0xff] %vm409, %v920
    %v923 = vld [vmem:[#allocation2 + $0x38] sm:$0xff]
    %v924 = vpack.c.bf16 %v917, %v917
    %926 = vrot.lane.b32.xlu0 %v924, 32
    %v927 = vpop.permute.xlu0 %926
    %v929 = vsel %vm409, %v927, 0
    %931 = vmatprep.subr.bf16.mxu0 0
    %932 = vmatpush1.bf16.msra.mxu0 %v406
    %933 = vmatprep.subr.bf16.mxu0 0
    %934 = vmatpush1.bf16.msra.mxu0 %v407
    %935 = vmatprep.subr.bf16.mxu0 0
    %936 = vmatpush1.bf16.msra.mxu0 0
    %937 = vmatprep.subr.bf16.mxu0 0
    %938 = vmatpush1.bf16.msra.mxu0 0
    %939 = vmatprep.subr.bf16.mxu0 0
    %940 = vmatpush1.bf16.msra.mxu0 0
    %941 = vmatprep.subr.bf16.mxu0 0
    %942 = vmatpush1.bf16.msra.mxu0 0
    %943 = vmatprep.subr.bf16.mxu0 0
    %944 = vmatpush1.bf16.msra.mxu0 0
    %945 = vmatprep.subr.bf16.mxu0 0
    %946 = vmatpush1.bf16.msra.mxu0 0
    %947 = vmatprep.subr.bf16.mxu0 0
    %948 = vmatpush1.bf16.msra.mxu0 0
    %949 = vmatprep.subr.bf16.mxu0 0
    %950 = vmatpush1.bf16.msra.mxu0 0
    %951 = vmatprep.subr.bf16.mxu0 0
    %952 = vmatpush1.bf16.msra.mxu0 0
    %953 = vmatprep.subr.bf16.mxu0 0
    %954 = vmatpush1.bf16.msra.mxu0 0
    %955 = vmatprep.subr.bf16.mxu0 0
    %956 = vmatpush1.bf16.msra.mxu0 0
    %957 = vmatprep.subr.bf16.mxu0 0
    %958 = vmatpush1.bf16.msra.mxu0 0
    %959 = vmatprep.subr.bf16.mxu0 0
    %960 = vmatpush1.bf16.msra.mxu0 0
    %961 = vmatprep.subr.bf16.mxu0 0
    %962 = vmatpush1.bf16.msra.mxu0 0
    %963 = vmatprep.mubr.bf16.mxu0 0
    %964 = vmatmul.mubr.bf16.gmra.mrb[0].mxu0 %v929
    %v965 = vpop.f32.mrb[0].mxu0
    %v966 = vadd.f32 0.0, %v965
    %v967 = vpop.f32.mrb[0].mxu0
    %v968 = vpop.f32.mrb[0].mxu0
    %v969 = vpop.f32.mrb[0].mxu0
    %970 = vdwg.mxu0
    %v971 = vadd.f32 %v923, %v966
    %v972 = vtanh.pop %v971
    %v973 = vmul.f32 %v972, 0.5
    %v974 = vadd.f32 %v973, 0.5
    %v975 = vmul.f32 %v974, %v911
    %977 = vrot.lane.b32.xlu0 %v972, 64
    %v978 = vpop.permute.xlu0 %977
    %v980 = vmul.f32 %v974, %v978
    %982 = vrot.lane.b32.xlu0 %v980, 32
    %v983 = vpop.permute.xlu0 %982
    %v985 = vadd.f32 %v975, %v983
    %v986 = vtanh.pop %v985
    %988 = vrot.lane.b32.xlu0 %v986, 64
    %v989 = vpop.permute.xlu0 %988
    %v991 = vmul.f32 %v974, %v989
    %993 = vrot.lane.b32.xlu0 %v991, 32
    %v994 = vpop.permute.xlu0 %993
    %996 = vst.msk [vmem:[#allocation3 + $0x38] sm:$0xff] %vm409, %v994
    %v997 = vld [vmem:[#allocation3] sm:$0xff]
    %v998 = vld [vmem:[#allocation3 + $0x8] sm:$0xff]
    %v999 = vld [vmem:[#allocation3 + $0x10] sm:$0xff]
    %v1000 = vld [vmem:[#allocation3 + $0x18] sm:$0xff]
    %v1001 = vld [vmem:[#allocation3 + $0x20] sm:$0xff]
    %v1002 = vld [vmem:[#allocation3 + $0x28] sm:$0xff]
    %v1003 = vld [vmem:[#allocation3 + $0x30] sm:$0xff]
    %v1004 = vld [vmem:[#allocation3 + $0x38] sm:$0xff]
    %v1005 = vld [vmem:[%s5] sm:$0xff]
    %v1006 = vld [vmem:[%s5 + $0x8] sm:$0xff]
    %v1007 = vld [vmem:[%s5 + $0x10] sm:$0xff]
    %v1008 = vld [vmem:[%s5 + $0x18] sm:$0xff]
    %v1010 = vsel %vm409, %v997, 0
    %v1013 = vsel %vm409, %v998, 0
    %v1016 = vsel %vm409, %v999, 0
    %v1019 = vsel %vm409, %v1000, 0
    %v1022 = vsel %vm409, %v1001, 0
    %v1025 = vsel %vm409, %v1002, 0
    %v1028 = vsel %vm409, %v1003, 0
    %v1031 = vsel %vm409, %v1004, 0
    %1033 = vmatprep.subr.mxu0 0.0
    %1034 = vmatpush1.msra.mxu0 %v1005
    %1035 = vmatprep.subr.mxu0 0.0
    %1036 = vmatpush1.msra.mxu0 %v1006
    %1037 = vmatprep.subr.mxu0 0.0
    %1038 = vmatpush1.msra.mxu0 %v1007
    %1039 = vmatprep.subr.mxu0 0.0
    %1040 = vmatpush1.msra.mxu0 %v1008
    %1041 = vmatprep.subr.mxu0 0.0
    %1042 = vmatpush1.msra.mxu0 0.0
    %1043 = vmatprep.subr.mxu0 0.0
    %1044 = vmatpush1.msra.mxu0 0.0
    %1045 = vmatprep.subr.mxu0 0.0
    %1046 = vmatpush1.msra.mxu0 0.0
    %1047 = vmatprep.subr.mxu0 0.0
    %1048 = vmatpush1.msra.mxu0 0.0
    %1049 = vmatprep.subr.mxu0 0.0
    %1050 = vmatpush1.msra.mxu0 0.0
    %1051 = vmatprep.subr.mxu0 0.0
    %1052 = vmatpush1.msra.mxu0 0.0
    %1053 = vmatprep.subr.mxu0 0.0
    %1054 = vmatpush1.msra.mxu0 0.0
    %1055 = vmatprep.subr.mxu0 0.0
    %1056 = vmatpush1.msra.mxu0 0.0
    %1057 = vmatprep.subr.mxu0 0.0
    %1058 = vmatpush1.msra.mxu0 0.0
    %1059 = vmatprep.subr.mxu0 0.0
    %1060 = vmatpush1.msra.mxu0 0.0
    %1061 = vmatprep.subr.mxu0 0.0
    %1062 = vmatpush1.msra.mxu0 0.0
    %1063 = vmatprep.subr.mxu0 0.0
    %1064 = vmatpush1.msra.mxu0 0.0
    %1065 = vmatprep.subr.mxu0 0.0
    %1066 = vmatpush1.msra.mxu0 0.0
    %1067 = vmatprep.subr.mxu0 0.0
    %1068 = vmatpush1.msra.mxu0 0.0
    %1069 = vmatprep.subr.mxu0 0.0
    %1070 = vmatpush1.msra.mxu0 0.0
    %1071 = vmatprep.subr.mxu0 0.0
    %1072 = vmatpush1.msra.mxu0 0.0
    %1073 = vmatprep.subr.mxu0 0.0
    %1074 = vmatpush1.msra.mxu0 0.0
    %1075 = vmatprep.subr.mxu0 0.0
    %1076 = vmatpush1.msra.mxu0 0.0
    %1077 = vmatprep.subr.mxu0 0.0
    %1078 = vmatpush1.msra.mxu0 0.0
    %1079 = vmatprep.subr.mxu0 0.0
    %1080 = vmatpush1.msra.mxu0 0.0
    %1081 = vmatprep.subr.mxu0 0.0
    %1082 = vmatpush1.msra.mxu0 0.0
    %1083 = vmatprep.subr.mxu0 0.0
    %1084 = vmatpush1.msra.mxu0 0.0
    %1085 = vmatprep.subr.mxu0 0.0
    %1086 = vmatpush1.msra.mxu0 0.0
    %1087 = vmatprep.subr.mxu0 0.0
    %1088 = vmatpush1.msra.mxu0 0.0
    %1089 = vmatprep.subr.mxu0 0.0
    %1090 = vmatpush1.msra.mxu0 0.0
    %1091 = vmatprep.subr.mxu0 0.0
    %1092 = vmatpush1.msra.mxu0 0.0
    %1093 = vmatprep.subr.mxu0 0.0
    %1094 = vmatpush1.msra.mxu0 0.0
    %1095 = vmatprep.subr.mxu0 0.0
    %1096 = vmatpush1.msra.mxu0 0.0
    %1097 = vmatprep.mubr.f32.mxu0 0.0
    %1098 = vmatmul.mubr.f32.gmra.mrb[0].mxu0 %v1010
    %v1099 = vpop.f32.mrb[0].mxu0
    %v1100 = vadd.f32 0.0, %v1099
    %v1101 = vpop.f32.mrb[0].mxu0
    %1102 = vmatprep.mubr.f32.mxu0 0.0
    %1103 = vmatmul.mubr.f32.gmra.mrb[0].mxu0 %v1013
    %v1104 = vpop.f32.mrb[0].mxu0
    %v1105 = vadd.f32 0.0, %v1104
    %v1106 = vpop.f32.mrb[0].mxu0
    %1107 = vmatprep.mubr.f32.mxu0 0.0
    %1108 = vmatmul.mubr.f32.gmra.mrb[0].mxu0 %v1016
    %v1109 = vpop.f32.mrb[0].mxu0
    %v1110 = vadd.f32 0.0, %v1109
    %v1111 = vpop.f32.mrb[0].mxu0
    %1112 = vmatprep.mubr.f32.mxu0 0.0
    %1113 = vmatmul.mubr.f32.gmra.mrb[0].mxu0 %v1019
    %v1114 = vpop.f32.mrb[0].mxu0
    %v1115 = vadd.f32 0.0, %v1114
    %v1116 = vpop.f32.mrb[0].mxu0
    %1117 = vmatprep.mubr.f32.mxu0 0.0
    %1118 = vmatmul.mubr.f32.gmra.mrb[0].mxu0 %v1022
    %v1119 = vpop.f32.mrb[0].mxu0
    %v1120 = vadd.f32 0.0, %v1119
    %v1121 = vpop.f32.mrb[0].mxu0
    %1122 = vmatprep.mubr.f32.mxu0 0.0
    %1123 = vmatmul.mubr.f32.gmra.mrb[0].mxu0 %v1025
    %v1124 = vpop.f32.mrb[0].mxu0
    %v1125 = vadd.f32 0.0, %v1124
    %v1126 = vpop.f32.mrb[0].mxu0
    %1127 = vmatprep.mubr.f32.mxu0 0.0
    %1128 = vmatmul.mubr.f32.gmra.mrb[0].mxu0 %v1028
    %v1129 = vpop.f32.mrb[0].mxu0
    %v1130 = vadd.f32 0.0, %v1129
    %v1131 = vpop.f32.mrb[0].mxu0
    %1132 = vmatprep.mubr.f32.mxu0 0.0
    %1133 = vmatmul.mubr.f32.gmra.mrb[0].mxu0 %v1031
    %v1134 = vpop.f32.mrb[0].mxu0
    %v1135 = vadd.f32 0.0, %v1134
    %v1136 = vpop.f32.mrb[0].mxu0
    %1137 = vdwg.mxu0
    %1145 = vrot.lane.b32.xlu0 %v1105, 120
    %v1146 = vpop.permute.xlu0 %1145
    %1147 = vrot.lane.b32.xlu0 %v1110, 120
    %v1148 = vpop.permute.xlu0 %1147
    %1149 = vrot.lane.b32.xlu0 %v1115, 120
    %v1150 = vpop.permute.xlu0 %1149
    %1151 = vrot.lane.b32.xlu0 %v1120, 120
    %v1152 = vpop.permute.xlu0 %1151
    %1153 = vrot.lane.b32.xlu0 %v1125, 120
    %v1154 = vpop.permute.xlu0 %1153
    %1155 = vrot.lane.b32.xlu0 %v1130, 120
    %v1156 = vpop.permute.xlu0 %1155
    %1157 = vrot.lane.b32.xlu0 %v1135, 120
    %v1158 = vpop.permute.xlu0 %1157
    %v1166 = vadd.f32 %v1100, %v1146
    %v1167 = vadd.f32 %v1105, %v1148
    %v1168 = vadd.f32 %v1110, %v1150
    %v1169 = vadd.f32 %v1115, %v1152
    %v1170 = vadd.f32 %v1120, %v1154
    %v1171 = vadd.f32 %v1125, %v1156
    %v1172 = vadd.f32 %v1130, %v1158
    %v1173 = vmax.f32 %v1166, %v1167
    %v1174 = vmax.f32 %v1173, %v1168
    %v1175 = vmax.f32 %v1174, %v1169
    %v1176 = vmax.f32 %v1175, %v1170
    %v1177 = vmax.f32 %v1176, %v1171
    %v1178 = vmax.f32 %v1177, %v1172
    %1179 = vrot.lane.b32.xlu0 %v1110, 112
    %v1180 = vpop.permute.xlu0 %1179
    %1181 = vrot.lane.b32.xlu0 %v1115, 112
    %v1182 = vpop.permute.xlu0 %1181
    %1183 = vrot.lane.b32.xlu0 %v1120, 112
    %v1184 = vpop.permute.xlu0 %1183
    %1185 = vrot.lane.b32.xlu0 %v1125, 112
    %v1186 = vpop.permute.xlu0 %1185
    %1187 = vrot.lane.b32.xlu0 %v1130, 112
    %v1188 = vpop.permute.xlu0 %1187
    %1189 = vrot.lane.b32.xlu0 %v1135, 112
    %v1190 = vpop.permute.xlu0 %1189
    %v1197 = vadd.f32 %v1166, %v1180
    %v1198 = vadd.f32 %v1167, %v1182
    %v1199 = vadd.f32 %v1168, %v1184
    %v1200 = vadd.f32 %v1169, %v1186
    %v1201 = vadd.f32 %v1170, %v1188
    %v1202 = vadd.f32 %v1171, %v1190
    %v1203 = vmax.f32 %v1197, %v1198
    %v1204 = vmax.f32 %v1203, %v1199
    %v1205 = vmax.f32 %v1204, %v1200
    %v1206 = vmax.f32 %v1205, %v1201
    %v1207 = vmax.f32 %v1206, %v1202
    %1208 = vrot.lane.b32.xlu0 %v1115, 104
    %v1209 = vpop.permute.xlu0 %1208
    %1210 = vrot.lane.b32.xlu0 %v1120, 104
    %v1211 = vpop.permute.xlu0 %1210
    %1212 = vrot.lane.b32.xlu0 %v1125, 104
    %v1213 = vpop.permute.xlu0 %1212
    %1214 = vrot.lane.b32.xlu0 %v1130, 104
    %v1215 = vpop.permute.xlu0 %1214
    %1216 = vrot.lane.b32.xlu0 %v1135, 104
    %v1217 = vpop.permute.xlu0 %1216
    %v1223 = vadd.f32 %v1197, %v1209
    %v1224 = vadd.f32 %v1198, %v1211
    %v1225 = vadd.f32 %v1199, %v1213
    %v1226 = vadd.f32 %v1200, %v1215
    %v1227 = vadd.f32 %v1201, %v1217
    %v1228 = vmax.f32 %v1223, %v1224
    %v1229 = vmax.f32 %v1228, %v1225
    %v1230 = vmax.f32 %v1229, %v1226
    %v1231 = vmax.f32 %v1230, %v1227
    %1233 = vrot.lane.b32.xlu0 %v1207, 120
    %v1234 = vpop.permute.xlu0 %1233
    %1237 = vrot.lane.b32.xlu0 %v1231, 104
    %v1238 = vpop.permute.xlu0 %1237
    %vm1240 = vcmask 64512
    %v1241 = vsel %vm1240, %v1178, %v1234
    %v1242 = vsel %vm252, %v1241, %v1238
    %v1243 = vld [vmem:[%s6] sm:$0x1]
    %v1245 = vlaneseq
    %v1246 = vshrl.u32 %v1245, 7
    %v1247 = vsub.s32 0, %v1246
    %v1248 = vrot.slane %v1243, %v1247
    %v1250 = vadd.f32 %v1242, %v1248
    %v1251 = vld [vmem:[%s7] sm:$0xff]
    %v1252 = vld [vmem:[%s7 + $0x8] sm:$0xff]
    %v1253 = vld [vmem:[%s7 + $0x10] sm:$0xff]
    %v1254 = vld [vmem:[%s8] sm:$0x1]
    %v1256 = vlaneseq
    %v1257 = vshrl.u32 %v1256, 7
    %v1258 = vsub.s32 0, %v1257
    %v1259 = vrot.slane %v1254, %v1258
    %vm1261 = vcmask 195584
    %v1263 = vsel %vm1261, %v1250, 0
    %1265 = vmatprep.subr.mxu0 0.0
    %1266 = vmatpush1.msra.mxu0 %v1251
    %1267 = vmatprep.subr.mxu0 0.0
    %1268 = vmatpush1.msra.mxu0 %v1252
    %1269 = vmatprep.subr.mxu0 0.0
    %1270 = vmatpush1.msra.mxu0 %v1253
    %1271 = vmatprep.subr.mxu0 0.0
    %1272 = vmatpush1.msra.mxu0 0.0
    %1273 = vmatprep.subr.mxu0 0.0
    %1274 = vmatpush1.msra.mxu0 0.0
    %1275 = vmatprep.subr.mxu0 0.0
    %1276 = vmatpush1.msra.mxu0 0.0
    %1277 = vmatprep.subr.mxu0 0.0
    %1278 = vmatpush1.msra.mxu0 0.0
    %1279 = vmatprep.subr.mxu0 0.0
    %1280 = vmatpush1.msra.mxu0 0.0
    %1281 = vmatprep.subr.mxu0 0.0
    %1282 = vmatpush1.msra.mxu0 0.0
    %1283 = vmatprep.subr.mxu0 0.0
    %1284 = vmatpush1.msra.mxu0 0.0
    %1285 = vmatprep.subr.mxu0 0.0
    %1286 = vmatpush1.msra.mxu0 0.0
    %1287 = vmatprep.subr.mxu0 0.0
    %1288 = vmatpush1.msra.mxu0 0.0
    %1289 = vmatprep.subr.mxu0 0.0
    %1290 = vmatpush1.msra.mxu0 0.0
    %1291 = vmatprep.subr.mxu0 0.0
    %1292 = vmatpush1.msra.mxu0 0.0
    %1293 = vmatprep.subr.mxu0 0.0
    %1294 = vmatpush1.msra.mxu0 0.0
    %1295 = vmatprep.subr.mxu0 0.0
    %1296 = vmatpush1.msra.mxu0 0.0
    %1297 = vmatprep.subr.mxu0 0.0
    %1298 = vmatpush1.msra.mxu0 0.0
    %1299 = vmatprep.subr.mxu0 0.0
    %1300 = vmatpush1.msra.mxu0 0.0
    %1301 = vmatprep.subr.mxu0 0.0
    %1302 = vmatpush1.msra.mxu0 0.0
    %1303 = vmatprep.subr.mxu0 0.0
    %1304 = vmatpush1.msra.mxu0 0.0
    %1305 = vmatprep.subr.mxu0 0.0
    %1306 = vmatpush1.msra.mxu0 0.0
    %1307 = vmatprep.subr.mxu0 0.0
    %1308 = vmatpush1.msra.mxu0 0.0
    %1309 = vmatprep.subr.mxu0 0.0
    %1310 = vmatpush1.msra.mxu0 0.0
    %1311 = vmatprep.subr.mxu0 0.0
    %1312 = vmatpush1.msra.mxu0 0.0
    %1313 = vmatprep.subr.mxu0 0.0
    %1314 = vmatpush1.msra.mxu0 0.0
    %1315 = vmatprep.subr.mxu0 0.0
    %1316 = vmatpush1.msra.mxu0 0.0
    %1317 = vmatprep.subr.mxu0 0.0
    %1318 = vmatpush1.msra.mxu0 0.0
    %1319 = vmatprep.subr.mxu0 0.0
    %1320 = vmatpush1.msra.mxu0 0.0
    %1321 = vmatprep.subr.mxu0 0.0
    %1322 = vmatpush1.msra.mxu0 0.0
    %1323 = vmatprep.subr.mxu0 0.0
    %1324 = vmatpush1.msra.mxu0 0.0
    %1325 = vmatprep.subr.mxu0 0.0
    %1326 = vmatpush1.msra.mxu0 0.0
    %1327 = vmatprep.subr.mxu0 0.0
    %1328 = vmatpush1.msra.mxu0 0.0
    %1329 = vmatprep.mubr.f32.mxu0 0.0
    %1330 = vmatmul.mubr.f32.gmra.mrb[0].mxu0 %v1263
    %v1331 = vpop.f32.mrb[0].mxu0
    %v1332 = vadd.f32 %v1259, %v1331
    %v1333 = vpop.f32.mrb[0].mxu0
    %1334 = vdwg.mxu0
    %v1335 = vmax.f32 %v1332, 0.0
    %v1336 = vld [vmem:[%s9] sm:$0xff]
    %v1337 = vld [vmem:[%s9 + $0x8] sm:$0xff]
    %v1338 = vld [vmem:[%s9 + $0x10] sm:$0xff]
    %v1339 = vld [vmem:[%s9 + $0x18] sm:$0xff]
    %v1340 = vld [vmem:[%s10] sm:$0x1]
    %v1342 = vlaneseq
    %v1343 = vshrl.u32 %v1342, 7
    %v1344 = vsub.s32 0, %v1343
    %v1345 = vrot.slane %v1340, %v1344
    %v1348 = vsel %vm409, %v1335, 0
    %1350 = vmatprep.subr.mxu0 0.0
    %1351 = vmatpush1.msra.mxu0 %v1336
    %1352 = vmatprep.subr.mxu0 0.0
    %1353 = vmatpush1.msra.mxu0 %v1337
    %1354 = vmatprep.subr.mxu0 0.0
    %1355 = vmatpush1.msra.mxu0 %v1338
    %1356 = vmatprep.subr.mxu0 0.0
    %1357 = vmatpush1.msra.mxu0 %v1339
    %1358 = vmatprep.subr.mxu0 0.0
    %1359 = vmatpush1.msra.mxu0 0.0
    %1360 = vmatprep.subr.mxu0 0.0
    %1361 = vmatpush1.msra.mxu0 0.0
    %1362 = vmatprep.subr.mxu0 0.0
    %1363 = vmatpush1.msra.mxu0 0.0
    %1364 = vmatprep.subr.mxu0 0.0
    %1365 = vmatpush1.msra.mxu0 0.0
    %1366 = vmatprep.subr.mxu0 0.0
    %1367 = vmatpush1.msra.mxu0 0.0
    %1368 = vmatprep.subr.mxu0 0.0
    %1369 = vmatpush1.msra.mxu0 0.0
    %1370 = vmatprep.subr.mxu0 0.0
    %1371 = vmatpush1.msra.mxu0 0.0
    %1372 = vmatprep.subr.mxu0 0.0
    %1373 = vmatpush1.msra.mxu0 0.0
    %1374 = vmatprep.subr.mxu0 0.0
    %1375 = vmatpush1.msra.mxu0 0.0
    %1376 = vmatprep.subr.mxu0 0.0
    %1377 = vmatpush1.msra.mxu0 0.0
    %1378 = vmatprep.subr.mxu0 0.0
    %1379 = vmatpush1.msra.mxu0 0.0
    %1380 = vmatprep.subr.mxu0 0.0
    %1381 = vmatpush1.msra.mxu0 0.0
    %1382 = vmatprep.subr.mxu0 0.0
    %1383 = vmatpush1.msra.mxu0 0.0
    %1384 = vmatprep.subr.mxu0 0.0
    %1385 = vmatpush1.msra.mxu0 0.0
    %1386 = vmatprep.subr.mxu0 0.0
    %1387 = vmatpush1.msra.mxu0 0.0
    %1388 = vmatprep.subr.mxu0 0.0
    %1389 = vmatpush1.msra.mxu0 0.0
    %1390 = vmatprep.subr.mxu0 0.0
    %1391 = vmatpush1.msra.mxu0 0.0
    %1392 = vmatprep.subr.mxu0 0.0
    %1393 = vmatpush1.msra.mxu0 0.0
    %1394 = vmatprep.subr.mxu0 0.0
    %1395 = vmatpush1.msra.mxu0 0.0
    %1396 = vmatprep.subr.mxu0 0.0
    %1397 = vmatpush1.msra.mxu0 0.0
    %1398 = vmatprep.subr.mxu0 0.0
    %1399 = vmatpush1.msra.mxu0 0.0
    %1400 = vmatprep.subr.mxu0 0.0
    %1401 = vmatpush1.msra.mxu0 0.0
    %1402 = vmatprep.subr.mxu0 0.0
    %1403 = vmatpush1.msra.mxu0 0.0
    %1404 = vmatprep.subr.mxu0 0.0
    %1405 = vmatpush1.msra.mxu0 0.0
    %1406 = vmatprep.subr.mxu0 0.0
    %1407 = vmatpush1.msra.mxu0 0.0
    %1408 = vmatprep.subr.mxu0 0.0
    %1409 = vmatpush1.msra.mxu0 0.0
    %1410 = vmatprep.subr.mxu0 0.0
    %1411 = vmatpush1.msra.mxu0 0.0
    %1412 = vmatprep.subr.mxu0 0.0
    %1413 = vmatpush1.msra.mxu0 0.0
    %1414 = vmatprep.mubr.f32.mxu0 0.0
    %1415 = vmatmul.mubr.f32.gmra.mrb[0].mxu0 %v1348
    %v1416 = vpop.f32.mrb[0].mxu0
    %v1417 = vadd.f32 %v1345, %v1416
    %v1418 = vpop.f32.mrb[0].mxu0
    %1419 = vdwg.mxu0
    %vm1420 = vcmask 33792
    %1421 = vst.msk [vmem:[#allocation4] sm:$0x3] %vm1420, %v1417
    // Predicated region
    $region46: #{tpu_custom_call.1} parent=1 // pred_check
      _
    $region47: #{tpu_custom_call.1} parent=1 // pred_check_branch
      %1423 = sbr.rel (0) target = $region49
    $region48: #{tpu_custom_call.1} parent=1 // pred_region
      %s1425 = ssub.s32 32, 32
      %1426 = vsyncadd [#allocation5], %s1425
      %s1428 = sshll.u32 [#allocation4], 4
      %s1429 = int_to_ptr.vmem [resolvable:$true] %s1428
      %1431 = dma.vmem_to_hbm [thread:$0]  %s1429, 32, %s11, [#allocation5]
    $region49: #{tpu_custom_call.1} parent=1 // pred_fallthru
      _
    // Predicated region
    $region50: #{tpu_custom_call.1} parent=1 // pred_check
      _
    $region51: #{tpu_custom_call.1} parent=1 // pred_check_branch
      %1433 = sbr.rel (0) target = $region53
    $region52: #{tpu_custom_call.1} parent=1 // pred_region
      %1434 = dma.done [#allocation5], 32
    $region53: #{tpu_custom_call.1} parent=1 // pred_fallthru
      _
    %1435 = vsyncpa [#allocation5], 1

</llo_original>
